<compile_context>
chip_gen: v7x
topology: tpu7x:2x2x1
jax: 0.10.0
libtpu: 0.0.40
codegen_flags: <defaults>
</compile_context>

<pallas_src>
import functools

import jax
import jax.numpy as jnp
from jax.experimental import pallas as pl
from jax.experimental.pallas import tpu as pltpu


def _round_up(x, m):
    return (x + m - 1) // m * m


def ae_kernel(x_ref, w_ref, b_ref, o_ref, *, n_layers, n_enc):
    """Whole autoencoder forward for one batch tile.

    x_ref: [bt, P]          activation tile (P = padded, lane-dense feature width)
    w_ref: [L, P, P]        all layer weights, resident in VMEM
    b_ref: [L, 1, P]        all layer biases (f32), resident in VMEM
    o_ref: [bt, P]          output tile
    """
    compute_dtype = w_ref.dtype
    h = x_ref[...]
    if h.dtype != compute_dtype:
        h = h.astype(compute_dtype)

    for layer in range(n_layers):
        # MXU matmul with f32 accumulation; bias add + tanh stay in f32 regardless
        # of compute dtype (accuracy + v5e has no bf16 VPU/EUP).
        acc = jnp.dot(h, w_ref[layer], preferred_element_type=jnp.float32)
        acc = acc + b_ref[layer]
        last_of_stack = (layer == n_enc - 1) or (layer == n_layers - 1)
        if not last_of_stack:
            acc = jnp.tanh(acc)
        if layer < n_layers - 1 and compute_dtype != jnp.float32:
            h = acc.astype(compute_dtype)   # back to bf16 for the next MXU pass
        else:
            h = acc

    o_ref[...] = h.astype(o_ref.dtype)


def ae_forward(x, params, *, batch_tile=None, compute_dtype=jnp.float32):
    """params: list of (W [d_in,d_out], b [1,d_out]) for the 2*n Linear layers."""
    B, D_in = x.shape
    L = len(params)
    n_enc = L // 2
    D_out = params[-1][0].shape[1]

    # ---- uniform lane-dense padded feature width -------------------------------
    dims = [D_in] + [w.shape[1] for (w, _) in params]
    P = max(_round_up(d, 128) for d in dims)

    # ---- pack + pad weights/biases into two resident slabs ---------------------
    w_all = jnp.zeros((L, P, P), dtype=compute_dtype)
    b_all = jnp.zeros((L, 1, P), dtype=jnp.float32)
    for l, (w, b) in enumerate(params):
        di, do = w.shape
        w_all = w_all.at[l, :di, :do].set(w.astype(compute_dtype))
        b_all = b_all.at[l, :, :do].set(b.reshape(1, do).astype(jnp.float32))

    # ---- batch tiling: big tiles, but keep >=2 blocks for v7x's 2 TensorCores --
    if batch_tile is None:
        B8 = _round_up(B, 8)
        batch_tile = min(512, B8)
        if batch_tile == B8 and B8 >= 16:
            batch_tile = _round_up(B8 // 2, 8)
    bt = _round_up(int(batch_tile), 8)
    nblocks = pl.cdiv(B, bt)
    B_pad = bt * nblocks

    x_pad = jnp.zeros((B_pad, P), dtype=x.dtype)
    x_pad = x_pad.at[:B, :D_in].set(x)

    # ---- VMEM budget (weights are grid-invariant; double-buffered by default) --
    # TODO(synk): for production hidden sizes on v7x (64 MiB VMEM), single-buffer
    # the invariant weight/bias operands (pipeline_mode=pl.Buffered(1)).
    itemsize_w = jnp.dtype(compute_dtype).itemsize
    vmem_bytes = (2 * L * P * P * itemsize_w          # weights (2 pipeline buffers)
                  + 2 * L * P * 4                     # biases
                  + 2 * 2 * bt * P * x.dtype.itemsize # x + out, double-buffered
                  + 4 * bt * P * 4)                   # f32 intermediates headroom
    vmem_limit = min(64 << 20, max(32 << 20, int(vmem_bytes) + (4 << 20)))

    cost = pl.CostEstimate(
        flops=int(2 * B_pad * L * P * P),
        transcendentals=int(B_pad * (L - 2) * P),
        bytes_accessed=int(x_pad.size * x_pad.dtype.itemsize
                           + w_all.size * w_all.dtype.itemsize
                           + b_all.size * b_all.dtype.itemsize
                           + B_pad * P * x.dtype.itemsize),
    )

    out = pl.pallas_call(
        functools.partial(ae_kernel, n_layers=L, n_enc=n_enc),
        out_shape=jax.ShapeDtypeStruct((B_pad, P), x.dtype),
        grid_spec=pltpu.PrefetchScalarGridSpec(
            num_scalar_prefetch=0,
            grid=(nblocks,),
            in_specs=[
                pl.BlockSpec((bt, P), lambda i: (i, 0)),        # activations tile
                pl.BlockSpec((L, P, P), lambda i: (0, 0, 0)),   # all weights, resident
                pl.BlockSpec((L, 1, P), lambda i: (0, 0, 0)),   # all biases, resident
            ],
            out_specs=pl.BlockSpec((bt, P), lambda i: (i, 0)),
        ),
        compiler_params=pltpu.CompilerParams(
            dimension_semantics=("parallel",),
            vmem_limit_bytes=vmem_limit,
        ),
        cost_estimate=cost,
    )(x_pad, w_all, b_all)

    return out[:B, :D_out]


def init_linear(key, d_in, d_out, dtype=jnp.float32):
    """Deterministic init mimicking torch.nn.Linear default (uniform +-1/sqrt(fan_in))."""
    kw, kb = jax.random.split(key)
    bound = 1.0 / jnp.sqrt(jnp.float32(d_in))
    w = jax.random.uniform(kw, (d_in, d_out), dtype, minval=-bound, maxval=bound)
    b = jax.random.uniform(kb, (1, d_out), dtype, minval=-bound, maxval=bound)
    return w, b


def build_ae_params(key, shape, embedding_size, hidden_size, layers):
    assert layers % 2 == 0 and layers >= 4
    n_half = layers // 2  # Linear layers per FCStack
    enc_dims = [shape] + [hidden_size] * (n_half - 1) + [embedding_size]
    dec_dims = [embedding_size] + [hidden_size] * (n_half - 1) + [shape]
    dims = list(zip(enc_dims[:-1], enc_dims[1:])) + list(zip(dec_dims[:-1], dec_dims[1:]))
    keys = jax.random.split(key, len(dims))
    return [init_linear(k, di, do) for k, (di, do) in zip(keys, dims)]


def ae_reference(x, params):
    """Pure-JAX reference of the same forward (tanh MLP autoencoder)."""
    n = len(params)
    half = n // 2
    h = x
    for i, (w, b) in enumerate(params):
        h = h @ w + b
        if not (i == half - 1 or i == n - 1):
            h = jnp.tanh(h)
    return h


if __name__ == "__main__":
    # Small shapes consistent with the module defaults (scaled down):
    # shape (flattened input dim) = 16, hidden_size = 32, embedding_size = 8, layers = 6
    SHAPE = 16
    HIDDEN = 32
    EMB = 8
    LAYERS = 6
    BATCH = 512   # large enough that the batch tile (256) does real work, 2 grid blocks

    key = jax.random.PRNGKey(0)
    kx, kp = jax.random.split(key)
    x = jax.random.normal(kx, (BATCH, SHAPE), dtype=jnp.float32)
    params = build_ae_params(kp, SHAPE, EMB, HIDDEN, LAYERS)

    ref = ae_reference(x, params)

    # f32 path (exact check)
    out_f32 = jax.block_until_ready(ae_forward(x, params, compute_dtype=jnp.float32))
    assert out_f32.shape == (BATCH, SHAPE)
    assert jnp.allclose(out_f32, ref, atol=1e-5, rtol=1e-5), \
        "Pallas kernel (f32) mismatch vs JAX reference"

    # bf16-weights/activations path (MXU-fast on v6e/v7x; f32 tanh kept everywhere)
    out_bf16 = jax.block_until_ready(ae_forward(x, params, compute_dtype=jnp.bfloat16))
    max_err = float(jnp.max(jnp.abs(out_bf16 - ref)))
    assert max_err < 0.1, f"Pallas kernel (bf16) error too large: {max_err}"

    print("KERNEL_OK")
</pallas_src>

<mosaic_0001>
module attributes {stable_mosaic.version = 11 : i64} {
  func.func @ae_kernel(%arg0: i32, %arg1: memref<256x128xf32, #tpu.memory_space<vmem>>, %arg2: memref<6x128x128xf32, #tpu.memory_space<vmem>>, %arg3: memref<6x1x128xf32, #tpu.memory_space<vmem>>, %arg4: memref<256x128xf32, #tpu.memory_space<vmem>>) attributes {dimension_semantics = [#tpu.dimension_semantics<parallel>], iteration_bounds = array<i64: 2>, scalar_prefetch = 0 : i64, scratch_operands = 0 : i64, tpu.core_type = #tpu.core_type<tc>, window_params = [{transform_indices = @transform_0, window_bounds = array<i64: 256, 128>}, {pipeline_mode = #tpu.pipeline_mode<synchronous>, transform_indices = @transform_1, window_bounds = array<i64: 6, 128, 128>}, {pipeline_mode = #tpu.pipeline_mode<synchronous>, transform_indices = @transform_2, window_bounds = array<i64: 6, 1, 128>}, {transform_indices = @transform_3, window_bounds = array<i64: 256, 128>}]} {
    %c0 = arith.constant 0 : index
    %c0_0 = arith.constant 0 : index
    %0 = vector.load %arg1[%c0, %c0_0] : memref<256x128xf32, #tpu.memory_space<vmem>>, vector<256x128xf32>
    %c0_1 = arith.constant 0 : index
    %c0_2 = arith.constant 0 : index
    %c0_3 = arith.constant 0 : index
    %1 = vector.load %arg2[%c0_1, %c0_2, %c0_3] : memref<6x128x128xf32, #tpu.memory_space<vmem>>, vector<1x128x128xf32>
    %2 = vector.shape_cast %1 : vector<1x128x128xf32> to vector<128x128xf32>
    %cst = arith.constant dense<0.000000e+00> : vector<256x128xf32>
    %3 = tpu.matmul %0, %2, %cst {dimension_numbers = #tpu.dot_dimension_numbers<[1], [0], [0], [1], [0, 0, 1, 1], [], []>} : vector<256x128xf32>, vector<128x128xf32>, vector<256x128xf32> -> vector<256x128xf32>
    %c0_4 = arith.constant 0 : index
    %c0_5 = arith.constant 0 : index
    %c0_6 = arith.constant 0 : index
    %4 = vector.load %arg3[%c0_4, %c0_5, %c0_6] : memref<6x1x128xf32, #tpu.memory_space<vmem>>, vector<1x1x128xf32>
    %5 = vector.shape_cast %4 : vector<1x1x128xf32> to vector<1x128xf32>
    %6 = vector.broadcast %5 : vector<1x128xf32> to vector<256x128xf32>
    %7 = arith.addf %3, %6 : vector<256x128xf32>
    %8 = math.tanh %7 : vector<256x128xf32>
    %c1 = arith.constant 1 : index
    %c0_7 = arith.constant 0 : index
    %c0_8 = arith.constant 0 : index
    %9 = vector.load %arg2[%c1, %c0_7, %c0_8] : memref<6x128x128xf32, #tpu.memory_space<vmem>>, vector<1x128x128xf32>
    %10 = vector.shape_cast %9 : vector<1x128x128xf32> to vector<128x128xf32>
    %cst_9 = arith.constant dense<0.000000e+00> : vector<256x128xf32>
    %11 = tpu.matmul %8, %10, %cst_9 {dimension_numbers = #tpu.dot_dimension_numbers<[1], [0], [0], [1], [0, 0, 1, 1], [], []>} : vector<256x128xf32>, vector<128x128xf32>, vector<256x128xf32> -> vector<256x128xf32>
    %c1_10 = arith.constant 1 : index
    %c0_11 = arith.constant 0 : index
    %c0_12 = arith.constant 0 : index
    %12 = vector.load %arg3[%c1_10, %c0_11, %c0_12] : memref<6x1x128xf32, #tpu.memory_space<vmem>>, vector<1x1x128xf32>
    %13 = vector.shape_cast %12 : vector<1x1x128xf32> to vector<1x128xf32>
    %14 = vector.broadcast %13 : vector<1x128xf32> to vector<256x128xf32>
    %15 = arith.addf %11, %14 : vector<256x128xf32>
    %16 = math.tanh %15 : vector<256x128xf32>
    %c2 = arith.constant 2 : index
    %c0_13 = arith.constant 0 : index
    %c0_14 = arith.constant 0 : index
    %17 = vector.load %arg2[%c2, %c0_13, %c0_14] : memref<6x128x128xf32, #tpu.memory_space<vmem>>, vector<1x128x128xf32>
    %18 = vector.shape_cast %17 : vector<1x128x128xf32> to vector<128x128xf32>
    %cst_15 = arith.constant dense<0.000000e+00> : vector<256x128xf32>
    %19 = tpu.matmul %16, %18, %cst_15 {dimension_numbers = #tpu.dot_dimension_numbers<[1], [0], [0], [1], [0, 0, 1, 1], [], []>} : vector<256x128xf32>, vector<128x128xf32>, vector<256x128xf32> -> vector<256x128xf32>
    %c2_16 = arith.constant 2 : index
    %c0_17 = arith.constant 0 : index
    %c0_18 = arith.constant 0 : index
    %20 = vector.load %arg3[%c2_16, %c0_17, %c0_18] : memref<6x1x128xf32, #tpu.memory_space<vmem>>, vector<1x1x128xf32>
    %21 = vector.shape_cast %20 : vector<1x1x128xf32> to vector<1x128xf32>
    %22 = vector.broadcast %21 : vector<1x128xf32> to vector<256x128xf32>
    %23 = arith.addf %19, %22 : vector<256x128xf32>
    %c3 = arith.constant 3 : index
    %c0_19 = arith.constant 0 : index
    %c0_20 = arith.constant 0 : index
    %24 = vector.load %arg2[%c3, %c0_19, %c0_20] : memref<6x128x128xf32, #tpu.memory_space<vmem>>, vector<1x128x128xf32>
    %25 = vector.shape_cast %24 : vector<1x128x128xf32> to vector<128x128xf32>
    %cst_21 = arith.constant dense<0.000000e+00> : vector<256x128xf32>
    %26 = tpu.matmul %23, %25, %cst_21 {dimension_numbers = #tpu.dot_dimension_numbers<[1], [0], [0], [1], [0, 0, 1, 1], [], []>} : vector<256x128xf32>, vector<128x128xf32>, vector<256x128xf32> -> vector<256x128xf32>
    %c3_22 = arith.constant 3 : index
    %c0_23 = arith.constant 0 : index
    %c0_24 = arith.constant 0 : index
    %27 = vector.load %arg3[%c3_22, %c0_23, %c0_24] : memref<6x1x128xf32, #tpu.memory_space<vmem>>, vector<1x1x128xf32>
    %28 = vector.shape_cast %27 : vector<1x1x128xf32> to vector<1x128xf32>
    %29 = vector.broadcast %28 : vector<1x128xf32> to vector<256x128xf32>
    %30 = arith.addf %26, %29 : vector<256x128xf32>
    %31 = math.tanh %30 : vector<256x128xf32>
    %c4 = arith.constant 4 : index
    %c0_25 = arith.constant 0 : index
    %c0_26 = arith.constant 0 : index
    %32 = vector.load %arg2[%c4, %c0_25, %c0_26] : memref<6x128x128xf32, #tpu.memory_space<vmem>>, vector<1x128x128xf32>
    %33 = vector.shape_cast %32 : vector<1x128x128xf32> to vector<128x128xf32>
    %cst_27 = arith.constant dense<0.000000e+00> : vector<256x128xf32>
    %34 = tpu.matmul %31, %33, %cst_27 {dimension_numbers = #tpu.dot_dimension_numbers<[1], [0], [0], [1], [0, 0, 1, 1], [], []>} : vector<256x128xf32>, vector<128x128xf32>, vector<256x128xf32> -> vector<256x128xf32>
    %c4_28 = arith.constant 4 : index
    %c0_29 = arith.constant 0 : index
    %c0_30 = arith.constant 0 : index
    %35 = vector.load %arg3[%c4_28, %c0_29, %c0_30] : memref<6x1x128xf32, #tpu.memory_space<vmem>>, vector<1x1x128xf32>
    %36 = vector.shape_cast %35 : vector<1x1x128xf32> to vector<1x128xf32>
    %37 = vector.broadcast %36 : vector<1x128xf32> to vector<256x128xf32>
    %38 = arith.addf %34, %37 : vector<256x128xf32>
    %39 = math.tanh %38 : vector<256x128xf32>
    %c5 = arith.constant 5 : index
    %c0_31 = arith.constant 0 : index
    %c0_32 = arith.constant 0 : index
    %40 = vector.load %arg2[%c5, %c0_31, %c0_32] : memref<6x128x128xf32, #tpu.memory_space<vmem>>, vector<1x128x128xf32>
    %41 = vector.shape_cast %40 : vector<1x128x128xf32> to vector<128x128xf32>
    %cst_33 = arith.constant dense<0.000000e+00> : vector<256x128xf32>
    %42 = tpu.matmul %39, %41, %cst_33 {dimension_numbers = #tpu.dot_dimension_numbers<[1], [0], [0], [1], [0, 0, 1, 1], [], []>} : vector<256x128xf32>, vector<128x128xf32>, vector<256x128xf32> -> vector<256x128xf32>
    %c5_34 = arith.constant 5 : index
    %c0_35 = arith.constant 0 : index
    %c0_36 = arith.constant 0 : index
    %43 = vector.load %arg3[%c5_34, %c0_35, %c0_36] : memref<6x1x128xf32, #tpu.memory_space<vmem>>, vector<1x1x128xf32>
    %44 = vector.shape_cast %43 : vector<1x1x128xf32> to vector<1x128xf32>
    %45 = vector.broadcast %44 : vector<1x128xf32> to vector<256x128xf32>
    %46 = arith.addf %42, %45 : vector<256x128xf32>
    %c0_37 = arith.constant 0 : index
    %c0_38 = arith.constant 0 : index
    %47 = vector.load %arg4[%c0_37, %c0_38] : memref<256x128xf32, #tpu.memory_space<vmem>>, vector<256x128xf32>
    tpu.vector_store %arg4[%c0_37, %c0_38], %46 {strides = array<i32>} : memref<256x128xf32, #tpu.memory_space<vmem>>, vector<256x128xf32>,
    return
  }
  func.func @transform_0(%arg0: i32) -> (i32, i32) {
    %c0_i32 = arith.constant 0 : i32
    %c0_i32_0 = arith.constant 0 : i32
    return %arg0, %c0_i32 : i32, i32
  }
  func.func @transform_1(%arg0: i32) -> (i32, i32, i32) {
    %c0_i32 = arith.constant 0 : i32
    %c0_i32_0 = arith.constant 0 : i32
    %c0_i32_1 = arith.constant 0 : i32
    %c0_i32_2 = arith.constant 0 : i32
    return %c0_i32, %c0_i32_0, %c0_i32_1 : i32, i32, i32
  }
  func.func @transform_2(%arg0: i32) -> (i32, i32, i32) {
    %c0_i32 = arith.constant 0 : i32
    %c0_i32_0 = arith.constant 0 : i32
    %c0_i32_1 = arith.constant 0 : i32
    %c0_i32_2 = arith.constant 0 : i32
    return %c0_i32, %c0_i32_0, %c0_i32_1 : i32, i32, i32
  }
  func.func @transform_3(%arg0: i32) -> (i32, i32) {
    %c0_i32 = arith.constant 0 : i32
    %c0_i32_0 = arith.constant 0 : i32
    return %arg0, %c0_i32 : i32, i32
  }
}

</mosaic_0001>

<llo_original>
// kernel: tpu_custom_call.1
$region0: #{tpu_custom_call.1}
  #allocation0 [shape = 'u32[]', space=smem, size = 0x4, offset = 0x4, fixed_abs, tag = 'smem constant byte address 0x4 - core index']
  #allocation1 [shape = 'u32[144,128]{1,0:T(1,128)}', space=vmem, size = 0x12000, scoped, tag = 'internal scratch']
  %s0 = inlined_call_operand.hbm [shape: f32[512,128], index: 0, kind: input, shape index: {}]
  %s1 = inlined_call_operand.hbm [shape: f32[6,128,128], index: 1, kind: input, shape index: {}]
  %s2 = inlined_call_operand.vmem [shape: f32[6,1,128], index: 2, kind: input, shape index: {}]
  %s3 = inlined_call_operand.hbm [shape: f32[512,128], index: 3, kind: output, shape index: {}]
  %s4 = sld [smem:[#allocation0]]
  $region53: #{tpu_custom_call.1} parent=0
    _
  %s6 = ssub.s32 1, %s4
  %s7 = scalar_select 0, %s6, %s4
  $region1: #{tpu_custom_call.1} parent=0
    #allocation2 [shape = 'u8[262144]{0}', space=vmem, size = 0x40000, scoped, tag = 'input window, operand 0']
    #allocation3 [shape = 's32[2]{0}', space=sflag, size = 0x8, scoped, tag = 'scoped memory for tpu_custom_call.1']
    #allocation4 [shape = 's32[2]{0}', space=sflag, size = 0x8, scoped, tag = 'scoped memory for tpu_custom_call.1']
    #allocation5 [shape = 'u8[393216]{0}', space=vmem, size = 0x60000, scoped, tag = 'input window, operand 1, single buffered']
    #allocation6 [shape = 's32[1]{0}', space=sflag, size = 0x4, scoped, tag = 'scoped memory for tpu_custom_call.1']
    #allocation7 [shape = 'u8[262144]{0}', space=vmem, size = 0x40000, scoped, tag = 'output window, operand 0']
    %8 = vsyncpa [#allocation3], 0
    %s9 = scalar_lea.sflag [#allocation3], 1
    %10 = vsyncpa %s9, 0
    %11 = vsyncpa [#allocation6], 0
    %12 = vsyncpa [#allocation4], 0
    %s13 = scalar_lea.sflag [#allocation4], 1
    %14 = vsyncpa %s13, 0
    loop: start=0, step=1, limit=4
    $region2: #{tpu_custom_call.1} parent=1 // loop_pre_header
      _
    $region3: #{tpu_custom_call.1} parent=1 // loop_header
      %s16 = sphi 0, %s20
      %p17 = scmp.ge.s32.totalorder %s16, 4
      %s26 = sphi 0, %s28
      %s29 = sphi 0, %s26
      %s30 = sphi 0, %s29
      %s46 = sphi 0, %s30
      %s50 = sphi 0, %s50
      %s52 = sphi 0, %s50
      %s53 = sphi 0, %s52
      %s67 = sphi 0, %s53
      %s71 = sphi 0, %s71
      %s73 = sphi 0, %s71
      %s74 = sphi 0, %s73
      %s88 = sphi 0, %s74
      %s94 = sphi 0, %s96
      %s97 = sphi 0, %s94
      %s98 = sphi 0, %s97
      %s114 = sphi 0, %s98
    $region4: #{tpu_custom_call.1} parent=1 // loop_header_branch
      %19 = sbr.rel (%p17) target = $region8
    $region5: #{tpu_custom_call.1} parent=1 // loop_body
      %s21 = ssub.s32 %s16, 1
      %s22 = ssub.s32 %s16, 2
      %s23 = sadd.s32 %s16, 1
      %s24 = ssub.s32 %s16, %s23
      %p25 = scmp.eq.s32.totalorder %s24, 0
      %s27 = sadd.s32 %s26, 1
      %s28 = scalar_select %p25, %s26, %s27
      %p31 = pneg %p25
      %p32 = scmp.eq.s32.totalorder %s16, 1
      %p33 = por %p31, %p32
      %p34 = scmp.ne.s32.totalorder %s26, %s29
      %p35 = scmp.eq.s32.totalorder %s16, 0
      %p36 = por %p34, %p35
      %p37 = scmp.ne.s32.totalorder %s26, %s29
      %p38 = scmp.eq.s32.totalorder %s21, 1
      %p39 = por %p37, %p38
      %p40 = scmp.ne.s32.totalorder %s29, %s30
      %p41 = scmp.eq.s32.totalorder %s21, 0
      %p42 = por %p40, %p41
      %p43 = scmp.ne.s32.totalorder %s29, %s30
      %p44 = scmp.eq.s32.totalorder %s22, 1
      %p45 = por %p43, %p44
      %p47 = scmp.ne.s32.totalorder %s30, %s46
      %p48 = scmp.eq.s32.totalorder %s22, 0
      %p49 = por %p47, %p48
      %s51 = sadd.s32 %s50, 1
      %p54 = scmp.eq.s32.totalorder %s16, 1
      %p55 = scmp.ne.s32.totalorder %s50, %s52
      %p56 = scmp.eq.s32.totalorder %s16, 0
      %p57 = por %p55, %p56
      %p58 = scmp.ne.s32.totalorder %s50, %s52
      %p59 = scmp.eq.s32.totalorder %s21, 1
      %p60 = por %p58, %p59
      %p61 = scmp.ne.s32.totalorder %s52, %s53
      %p62 = scmp.eq.s32.totalorder %s21, 0
      %p63 = por %p61, %p62
      %p64 = scmp.ne.s32.totalorder %s52, %s53
      %p65 = scmp.eq.s32.totalorder %s22, 1
      %p66 = por %p64, %p65
      %p68 = scmp.ne.s32.totalorder %s53, %s67
      %p69 = scmp.eq.s32.totalorder %s22, 0
      %p70 = por %p68, %p69
      %s72 = sadd.s32 %s71, 1
      %p75 = scmp.eq.s32.totalorder %s16, 1
      %p76 = scmp.ne.s32.totalorder %s71, %s73
      %p77 = scmp.eq.s32.totalorder %s16, 0
      %p78 = por %p76, %p77
      %p79 = scmp.ne.s32.totalorder %s71, %s73
      %p80 = scmp.eq.s32.totalorder %s21, 1
      %p81 = por %p79, %p80
      %p82 = scmp.ne.s32.totalorder %s73, %s74
      %p83 = scmp.eq.s32.totalorder %s21, 0
      %p84 = por %p82, %p83
      %p85 = scmp.ne.s32.totalorder %s73, %s74
      %p86 = scmp.eq.s32.totalorder %s22, 1
      %p87 = por %p85, %p86
      %p89 = scmp.ne.s32.totalorder %s74, %s88
      %p90 = scmp.eq.s32.totalorder %s22, 0
      %p91 = por %p89, %p90
      %s92 = ssub.s32 %s16, %s23
      %p93 = scmp.eq.s32.totalorder %s92, 0
      %s95 = sadd.s32 %s94, 1
      %s96 = scalar_select %p93, %s94, %s95
      %p99 = pneg %p93
      %p100 = scmp.eq.s32.totalorder %s16, 1
      %p101 = por %p99, %p100
      %p102 = scmp.ne.s32.totalorder %s94, %s97
      %p103 = scmp.eq.s32.totalorder %s16, 0
      %p104 = por %p102, %p103
      %p105 = scmp.ne.s32.totalorder %s94, %s97
      %p106 = scmp.eq.s32.totalorder %s21, 1
      %p107 = por %p105, %p106
      %p108 = scmp.ne.s32.totalorder %s97, %s98
      %p109 = scmp.eq.s32.totalorder %s21, 0
      %p110 = por %p108, %p109
      %p111 = scmp.ne.s32.totalorder %s97, %s98
      %p112 = scmp.eq.s32.totalorder %s22, 1
      %p113 = por %p111, %p112
      %p115 = scmp.ne.s32.totalorder %s98, %s114
      %p116 = scmp.eq.s32.totalorder %s22, 0
      %p117 = por %p115, %p116
      %p118 = scmp.le.s32.totalorder 1, %s16
      %p119 = scmp.lt.s32.totalorder %s16, 3
      %p120 = pnand %p118, %p119
      %p121 = pneg %p120
      // Predicated region
      $region9: #{tpu_custom_call.1} parent=5 // pred_check
        _
      $region10: #{tpu_custom_call.1} parent=5 // pred_check_branch
        %123 = sbr.rel (%p120) target = $region12
      $region11: #{tpu_custom_call.1} parent=5 // pred_region
        %s124 = ssub.s32 %s16, 1
        // Predicated region
        $region13: #{tpu_custom_call.1} parent=11 // pred_check
          %p125 = pneg %p63
        $region14: #{tpu_custom_call.1} parent=11 // pred_check_branch
          %127 = sbr.rel (%p125) target = $region16
        $region15: #{tpu_custom_call.1} parent=11 // pred_region
          %s129 = ssub.s32 12288, 12288
          %130 = vsyncadd [#allocation6], %s129
          %s131 = sshll.u32 [#allocation5], 4
          %s132 = int_to_ptr.vmem [resolvable:$true] %s131
          %137 = dma.hbm_to_vmem [thread:$0]  %s1, 12288, %s132, [#allocation6], 128, 128, 8
        $region16: #{tpu_custom_call.1} parent=11 // pred_fallthru
          _
        // Predicated region
        $region17: #{tpu_custom_call.1} parent=11 // pred_check
          %p138 = pneg %p84
        $region18: #{tpu_custom_call.1} parent=11 // pred_check_branch
          %140 = sbr.rel (%p138) target = $region20
        $region19: #{tpu_custom_call.1} parent=11 // pred_region
          _
        $region20: #{tpu_custom_call.1} parent=11 // pred_fallthru
          _
      $region12: #{tpu_custom_call.1} parent=5 // pred_fallthru
        _
      %p141 = scmp.lt.s32.totalorder %s16, 2
      // Predicated region
      $region21: #{tpu_custom_call.1} parent=5 // pred_check
        %p142 = pneg %p141
      $region22: #{tpu_custom_call.1} parent=5 // pred_check_branch
        %144 = sbr.rel (%p142) target = $region24
      $region23: #{tpu_custom_call.1} parent=5 // pred_region
        // Predicated region
        $region25: #{tpu_custom_call.1} parent=23 // pred_check
          %p145 = pneg %p36
        $region26: #{tpu_custom_call.1} parent=23 // pred_check_branch
          %147 = sbr.rel (%p145) target = $region28
        $region27: #{tpu_custom_call.1} parent=23 // pred_region
          %s148 = sand.u32 %s26, 1
          %s149 = scalar_lea.sflag [#allocation3], %s148
          %s150 = sand.u32 %s26, 1
          %s151 = smul.addr %s150, 256
          %s152 = scalar_lea.vmem [#allocation2], %s151
          %s153 = smul.u32 32, %s16
          %s155 = ssub.s32 4096, 4096
          %156 = vsyncadd %s149, %s155
          %s157 = smul.addr %s153, 128
          %s158 = scalar_lea.hbm %s0, %s157
          %s159 = sshll.u32 %s152, 4
          %s160 = int_to_ptr.vmem [resolvable:$true] %s159
          %165 = dma.hbm_to_vmem [thread:$0]  %s158, 4096, %s160, %s149, 128, 128, 8
        $region28: #{tpu_custom_call.1} parent=23 // pred_fallthru
          _
      $region24: #{tpu_custom_call.1} parent=5 // pred_fallthru
        _
      %p166 = scmp.le.s32.totalorder 1, %s16
      %p167 = scmp.lt.s32.totalorder %s16, 3
      %p168 = pnand %p166, %p167
      %p169 = pneg %p168
      // Predicated region
      $region29: #{tpu_custom_call.1} parent=5 // pred_check
        _
      $region30: #{tpu_custom_call.1} parent=5 // pred_check_branch
        %171 = sbr.rel (%p168) target = $region32
      $region31: #{tpu_custom_call.1} parent=5 // pred_region
        %s172 = ssub.s32 %s16, 1
        %s173 = sand.u32 %s29, 1
        %s174 = scalar_lea.sflag [#allocation3], %s173
        %s175 = sand.u32 %s29, 1
        %s176 = smul.addr %s175, 256
        %s177 = scalar_lea.vmem [#allocation2], %s176
        // Predicated region
        $region33: #{tpu_custom_call.1} parent=31 // pred_check
          %p178 = pneg %p42
        $region34: #{tpu_custom_call.1} parent=31 // pred_check_branch
          %180 = sbr.rel (%p178) target = $region36
        $region35: #{tpu_custom_call.1} parent=31 // pred_region
          %181 = dma.done %s174, 4096
        $region36: #{tpu_custom_call.1} parent=31 // pred_fallthru
          _
        // Predicated region
        $region37: #{tpu_custom_call.1} parent=31 // pred_check
          %p182 = pneg %p63
        $region38: #{tpu_custom_call.1} parent=31 // pred_check_branch
          %184 = sbr.rel (%p182) target = $region40
        $region39: #{tpu_custom_call.1} parent=31 // pred_region
          %185 = dma.done [#allocation6], 12288
        $region40: #{tpu_custom_call.1} parent=31 // pred_fallthru
          _
        %s186 = sand.u32 %s29, 1
        %s187 = scalar_lea.sflag [#allocation3], %s186
        %s188 = sand.u32 %s29, 1
        %s189 = smul.addr %s188, 256
        %s190 = scalar_lea.vmem [#allocation2], %s189
        %p191 = pneg %p42
        %p192 = pneg %p39
        %p193 = pneg %p63
        %p194 = pneg %p60
        %p195 = pneg %p84
        %p196 = pneg %p81
        %p197 = pneg %p110
        %p198 = pneg %p107
        %s199 = sand.u32 %s97, 1
        %s200 = scalar_lea.sflag [#allocation4], %s199
        %s201 = sand.u32 %s97, 1
        %s202 = smul.addr %s201, 256
        %s203 = scalar_lea.vmem [#allocation7], %s202
        %s204 = smul.u32 32, %s21
        %s205 = smul.u32 32, %s21
        %v206 = vld [vmem:[%s177] sm:$0xff]
        %v207 = vld [vmem:[%s177 + $0x8] sm:$0xff]
        %v208 = vld [vmem:[%s177 + $0x10] sm:$0xff]
        %v209 = vld [vmem:[%s177 + $0x18] sm:$0xff]
        %v210 = vld [vmem:[%s177 + $0x20] sm:$0xff]
        %v211 = vld [vmem:[%s177 + $0x28] sm:$0xff]
        %v212 = vld [vmem:[%s177 + $0x30] sm:$0xff]
        %v213 = vld [vmem:[%s177 + $0x38] sm:$0xff]
        %v214 = vld [vmem:[%s177 + $0x40] sm:$0xff]
        %v215 = vld [vmem:[%s177 + $0x48] sm:$0xff]
        %v216 = vld [vmem:[%s177 + $0x50] sm:$0xff]
        %v217 = vld [vmem:[%s177 + $0x58] sm:$0xff]
        %v218 = vld [vmem:[%s177 + $0x60] sm:$0xff]
        %v219 = vld [vmem:[%s177 + $0x68] sm:$0xff]
        %v220 = vld [vmem:[%s177 + $0x70] sm:$0xff]
        %v221 = vld [vmem:[%s177 + $0x78] sm:$0xff]
        %v222 = vld [vmem:[%s177 + $0x80] sm:$0xff]
        %v223 = vld [vmem:[%s177 + $0x88] sm:$0xff]
        %v224 = vld [vmem:[%s177 + $0x90] sm:$0xff]
        %v225 = vld [vmem:[%s177 + $0x98] sm:$0xff]
        %v226 = vld [vmem:[%s177 + $0xa0] sm:$0xff]
        %v227 = vld [vmem:[%s177 + $0xa8] sm:$0xff]
        %v228 = vld [vmem:[%s177 + $0xb0] sm:$0xff]
        %v229 = vld [vmem:[%s177 + $0xb8] sm:$0xff]
        %v230 = vld [vmem:[%s177 + $0xc0] sm:$0xff]
        %v231 = vld [vmem:[%s177 + $0xc8] sm:$0xff]
        %v232 = vld [vmem:[%s177 + $0xd0] sm:$0xff]
        %v233 = vld [vmem:[%s177 + $0xd8] sm:$0xff]
        %v234 = vld [vmem:[%s177 + $0xe0] sm:$0xff]
        %v235 = vld [vmem:[%s177 + $0xe8] sm:$0xff]
        %v236 = vld [vmem:[%s177 + $0xf0] sm:$0xff]
        %v237 = vld [vmem:[%s177 + $0xf8] sm:$0xff]
        %v238 = vld [vmem:[#allocation5] sm:$0xff]
        %v239 = vld [vmem:[#allocation5 + $0x8] sm:$0xff]
        %v240 = vld [vmem:[#allocation5 + $0x10] sm:$0xff]
        %v241 = vld [vmem:[#allocation5 + $0x18] sm:$0xff]
        %v242 = vld [vmem:[#allocation5 + $0x20] sm:$0xff]
        %v243 = vld [vmem:[#allocation5 + $0x28] sm:$0xff]
        %v244 = vld [vmem:[#allocation5 + $0x30] sm:$0xff]
        %v245 = vld [vmem:[#allocation5 + $0x38] sm:$0xff]
        %v246 = vld [vmem:[#allocation5 + $0x40] sm:$0xff]
        %v247 = vld [vmem:[#allocation5 + $0x48] sm:$0xff]
        %v248 = vld [vmem:[#allocation5 + $0x50] sm:$0xff]
        %v249 = vld [vmem:[#allocation5 + $0x58] sm:$0xff]
        %v250 = vld [vmem:[#allocation5 + $0x60] sm:$0xff]
        %v251 = vld [vmem:[#allocation5 + $0x68] sm:$0xff]
        %v252 = vld [vmem:[#allocation5 + $0x70] sm:$0xff]
        %v253 = vld [vmem:[#allocation5 + $0x78] sm:$0xff]
        %v254 = vld [vmem:[%s2] sm:$0x1]
        %v256 = vlaneseq
        %v257 = vshrl.u32 %v256, 7
        %v258 = vsub.s32 0, %v257
        %v259 = vrot.slane %v254, %v258
        %261 = vmatprep.subr.mxu0 0.0
        %262 = vmatpush1.msra.mxu0 %v238
        %263 = vmatprep.subr.mxu0 0.0
        %264 = vmatpush1.msra.mxu0 %v239
        %265 = vmatprep.subr.mxu0 0.0
        %266 = vmatpush1.msra.mxu0 %v240
        %267 = vmatprep.subr.mxu0 0.0
        %268 = vmatpush1.msra.mxu0 %v241
        %269 = vmatprep.subr.mxu0 0.0
        %270 = vmatpush1.msra.mxu0 %v242
        %271 = vmatprep.subr.mxu0 0.0
        %272 = vmatpush1.msra.mxu0 %v243
        %273 = vmatprep.subr.mxu0 0.0
        %274 = vmatpush1.msra.mxu0 %v244
        %275 = vmatprep.subr.mxu0 0.0
        %276 = vmatpush1.msra.mxu0 %v245
        %277 = vmatprep.subr.mxu0 0.0
        %278 = vmatpush1.msra.mxu0 %v246
        %279 = vmatprep.subr.mxu0 0.0
        %280 = vmatpush1.msra.mxu0 %v247
        %281 = vmatprep.subr.mxu0 0.0
        %282 = vmatpush1.msra.mxu0 %v248
        %283 = vmatprep.subr.mxu0 0.0
        %284 = vmatpush1.msra.mxu0 %v249
        %285 = vmatprep.subr.mxu0 0.0
        %286 = vmatpush1.msra.mxu0 %v250
        %287 = vmatprep.subr.mxu0 0.0
        %288 = vmatpush1.msra.mxu0 %v251
        %289 = vmatprep.subr.mxu0 0.0
        %290 = vmatpush1.msra.mxu0 %v252
        %291 = vmatprep.subr.mxu0 0.0
        %292 = vmatpush1.msra.mxu0 %v253
        %293 = vmatprep.subr.mxu0 0.0
        %294 = vmatpush1.msra.mxu0 0.0
        %295 = vmatprep.subr.mxu0 0.0
        %296 = vmatpush1.msra.mxu0 0.0
        %297 = vmatprep.subr.mxu0 0.0
        %298 = vmatpush1.msra.mxu0 0.0
        %299 = vmatprep.subr.mxu0 0.0
        %300 = vmatpush1.msra.mxu0 0.0
        %301 = vmatprep.subr.mxu0 0.0
        %302 = vmatpush1.msra.mxu0 0.0
        %303 = vmatprep.subr.mxu0 0.0
        %304 = vmatpush1.msra.mxu0 0.0
        %305 = vmatprep.subr.mxu0 0.0
        %306 = vmatpush1.msra.mxu0 0.0
        %307 = vmatprep.subr.mxu0 0.0
        %308 = vmatpush1.msra.mxu0 0.0
        %309 = vmatprep.subr.mxu0 0.0
        %310 = vmatpush1.msra.mxu0 0.0
        %311 = vmatprep.subr.mxu0 0.0
        %312 = vmatpush1.msra.mxu0 0.0
        %313 = vmatprep.subr.mxu0 0.0
        %314 = vmatpush1.msra.mxu0 0.0
        %315 = vmatprep.subr.mxu0 0.0
        %316 = vmatpush1.msra.mxu0 0.0
        %317 = vmatprep.subr.mxu0 0.0
        %318 = vmatpush1.msra.mxu0 0.0
        %319 = vmatprep.subr.mxu0 0.0
        %320 = vmatpush1.msra.mxu0 0.0
        %321 = vmatprep.subr.mxu0 0.0
        %322 = vmatpush1.msra.mxu0 0.0
        %323 = vmatprep.subr.mxu0 0.0
        %324 = vmatpush1.msra.mxu0 0.0
        %325 = vmatprep.mubr.f32.mxu0 0.0
        %326 = vmatmul.mubr.f32.gmra.mrb[0].mxu0 %v206
        %v327 = vpop.f32.mrb[0].mxu0
        %v328 = vadd.f32 %v259, %v327
        %v329 = vpop.f32.mrb[0].mxu0
        %330 = vmatprep.mubr.f32.mxu0 0.0
        %331 = vmatmul.mubr.f32.gmra.mrb[0].mxu0 %v207
        %v332 = vpop.f32.mrb[0].mxu0
        %v333 = vadd.f32 %v259, %v332
        %v334 = vpop.f32.mrb[0].mxu0
        %335 = vmatprep.mubr.f32.mxu0 0.0
        %336 = vmatmul.mubr.f32.gmra.mrb[0].mxu0 %v208
        %v337 = vpop.f32.mrb[0].mxu0
        %v338 = vadd.f32 %v259, %v337
        %v339 = vpop.f32.mrb[0].mxu0
        %340 = vmatprep.mubr.f32.mxu0 0.0
        %341 = vmatmul.mubr.f32.gmra.mrb[0].mxu0 %v209
        %v342 = vpop.f32.mrb[0].mxu0
        %v343 = vadd.f32 %v259, %v342
        %v344 = vpop.f32.mrb[0].mxu0
        %345 = vmatprep.mubr.f32.mxu0 0.0
        %346 = vmatmul.mubr.f32.gmra.mrb[0].mxu0 %v210
        %v347 = vpop.f32.mrb[0].mxu0
        %v348 = vadd.f32 %v259, %v347
        %v349 = vpop.f32.mrb[0].mxu0
        %350 = vmatprep.mubr.f32.mxu0 0.0
        %351 = vmatmul.mubr.f32.gmra.mrb[0].mxu0 %v211
        %v352 = vpop.f32.mrb[0].mxu0
        %v353 = vadd.f32 %v259, %v352
        %v354 = vpop.f32.mrb[0].mxu0
        %355 = vmatprep.mubr.f32.mxu0 0.0
        %356 = vmatmul.mubr.f32.gmra.mrb[0].mxu0 %v212
        %v357 = vpop.f32.mrb[0].mxu0
        %v358 = vadd.f32 %v259, %v357
        %v359 = vpop.f32.mrb[0].mxu0
        %360 = vmatprep.mubr.f32.mxu0 0.0
        %361 = vmatmul.mubr.f32.gmra.mrb[0].mxu0 %v213
        %v362 = vpop.f32.mrb[0].mxu0
        %v363 = vadd.f32 %v259, %v362
        %v364 = vpop.f32.mrb[0].mxu0
        %365 = vmatprep.mubr.f32.mxu0 0.0
        %366 = vmatmul.mubr.f32.gmra.mrb[0].mxu0 %v214
        %v367 = vpop.f32.mrb[0].mxu0
        %v368 = vadd.f32 %v259, %v367
        %v369 = vpop.f32.mrb[0].mxu0
        %370 = vmatprep.mubr.f32.mxu0 0.0
        %371 = vmatmul.mubr.f32.gmra.mrb[0].mxu0 %v215
        %v372 = vpop.f32.mrb[0].mxu0
        %v373 = vadd.f32 %v259, %v372
        %v374 = vpop.f32.mrb[0].mxu0
        %375 = vmatprep.mubr.f32.mxu0 0.0
        %376 = vmatmul.mubr.f32.gmra.mrb[0].mxu0 %v216
        %v377 = vpop.f32.mrb[0].mxu0
        %v378 = vadd.f32 %v259, %v377
        %v379 = vpop.f32.mrb[0].mxu0
        %380 = vmatprep.mubr.f32.mxu0 0.0
        %381 = vmatmul.mubr.f32.gmra.mrb[0].mxu0 %v217
        %v382 = vpop.f32.mrb[0].mxu0
        %v383 = vadd.f32 %v259, %v382
        %v384 = vpop.f32.mrb[0].mxu0
        %385 = vmatprep.mubr.f32.mxu0 0.0
        %386 = vmatmul.mubr.f32.gmra.mrb[0].mxu0 %v218
        %v387 = vpop.f32.mrb[0].mxu0
        %v388 = vadd.f32 %v259, %v387
        %v389 = vpop.f32.mrb[0].mxu0
        %390 = vmatprep.mubr.f32.mxu0 0.0
        %391 = vmatmul.mubr.f32.gmra.mrb[0].mxu0 %v219
        %v392 = vpop.f32.mrb[0].mxu0
        %v393 = vadd.f32 %v259, %v392
        %v394 = vpop.f32.mrb[0].mxu0
        %395 = vmatprep.mubr.f32.mxu0 0.0
        %396 = vmatmul.mubr.f32.gmra.mrb[0].mxu0 %v220
        %v397 = vpop.f32.mrb[0].mxu0
        %v398 = vadd.f32 %v259, %v397
        %v399 = vpop.f32.mrb[0].mxu0
        %400 = vmatprep.mubr.f32.mxu0 0.0
        %401 = vmatmul.mubr.f32.gmra.mrb[0].mxu0 %v221
        %v402 = vpop.f32.mrb[0].mxu0
        %v403 = vadd.f32 %v259, %v402
        %v404 = vpop.f32.mrb[0].mxu0
        %405 = vmatprep.mubr.f32.mxu0 0.0
        %406 = vmatmul.mubr.f32.gmra.mrb[0].mxu0 %v222
        %v407 = vpop.f32.mrb[0].mxu0
        %v408 = vadd.f32 %v259, %v407
        %v409 = vpop.f32.mrb[0].mxu0
        %410 = vmatprep.mubr.f32.mxu0 0.0
        %411 = vmatmul.mubr.f32.gmra.mrb[0].mxu0 %v223
        %v412 = vpop.f32.mrb[0].mxu0
        %v413 = vadd.f32 %v259, %v412
        %v414 = vpop.f32.mrb[0].mxu0
        %415 = vmatprep.mubr.f32.mxu0 0.0
        %416 = vmatmul.mubr.f32.gmra.mrb[0].mxu0 %v224
        %v417 = vpop.f32.mrb[0].mxu0
        %v418 = vadd.f32 %v259, %v417
        %v419 = vpop.f32.mrb[0].mxu0
        %420 = vmatprep.mubr.f32.mxu0 0.0
        %421 = vmatmul.mubr.f32.gmra.mrb[0].mxu0 %v225
        %v422 = vpop.f32.mrb[0].mxu0
        %v423 = vadd.f32 %v259, %v422
        %v424 = vpop.f32.mrb[0].mxu0
        %425 = vmatprep.mubr.f32.mxu0 0.0
        %426 = vmatmul.mubr.f32.gmra.mrb[0].mxu0 %v226
        %v427 = vpop.f32.mrb[0].mxu0
        %v428 = vadd.f32 %v259, %v427
        %v429 = vpop.f32.mrb[0].mxu0
        %430 = vmatprep.mubr.f32.mxu0 0.0
        %431 = vmatmul.mubr.f32.gmra.mrb[0].mxu0 %v227
        %v432 = vpop.f32.mrb[0].mxu0
        %v433 = vadd.f32 %v259, %v432
        %v434 = vpop.f32.mrb[0].mxu0
        %435 = vmatprep.mubr.f32.mxu0 0.0
        %436 = vmatmul.mubr.f32.gmra.mrb[0].mxu0 %v228
        %v437 = vpop.f32.mrb[0].mxu0
        %v438 = vadd.f32 %v259, %v437
        %v439 = vpop.f32.mrb[0].mxu0
        %440 = vmatprep.mubr.f32.mxu0 0.0
        %441 = vmatmul.mubr.f32.gmra.mrb[0].mxu0 %v229
        %v442 = vpop.f32.mrb[0].mxu0
        %v443 = vadd.f32 %v259, %v442
        %v444 = vpop.f32.mrb[0].mxu0
        %445 = vmatprep.mubr.f32.mxu0 0.0
        %446 = vmatmul.mubr.f32.gmra.mrb[0].mxu0 %v230
        %v447 = vpop.f32.mrb[0].mxu0
        %v448 = vadd.f32 %v259, %v447
        %v449 = vpop.f32.mrb[0].mxu0
        %450 = vmatprep.mubr.f32.mxu0 0.0
        %451 = vmatmul.mubr.f32.gmra.mrb[0].mxu0 %v231
        %v452 = vpop.f32.mrb[0].mxu0
        %v453 = vadd.f32 %v259, %v452
        %v454 = vpop.f32.mrb[0].mxu0
        %455 = vmatprep.mubr.f32.mxu0 0.0
        %456 = vmatmul.mubr.f32.gmra.mrb[0].mxu0 %v232
        %v457 = vpop.f32.mrb[0].mxu0
        %v458 = vadd.f32 %v259, %v457
        %v459 = vpop.f32.mrb[0].mxu0
        %460 = vmatprep.mubr.f32.mxu0 0.0
        %461 = vmatmul.mubr.f32.gmra.mrb[0].mxu0 %v233
        %v462 = vpop.f32.mrb[0].mxu0
        %v463 = vadd.f32 %v259, %v462
        %v464 = vpop.f32.mrb[0].mxu0
        %465 = vmatprep.mubr.f32.mxu0 0.0
        %466 = vmatmul.mubr.f32.gmra.mrb[0].mxu0 %v234
        %v467 = vpop.f32.mrb[0].mxu0
        %v468 = vadd.f32 %v259, %v467
        %v469 = vpop.f32.mrb[0].mxu0
        %470 = vmatprep.mubr.f32.mxu0 0.0
        %471 = vmatmul.mubr.f32.gmra.mrb[0].mxu0 %v235
        %v472 = vpop.f32.mrb[0].mxu0
        %v473 = vadd.f32 %v259, %v472
        %v474 = vpop.f32.mrb[0].mxu0
        %475 = vmatprep.mubr.f32.mxu0 0.0
        %476 = vmatmul.mubr.f32.gmra.mrb[0].mxu0 %v236
        %v477 = vpop.f32.mrb[0].mxu0
        %v478 = vadd.f32 %v259, %v477
        %v479 = vpop.f32.mrb[0].mxu0
        %480 = vmatprep.mubr.f32.mxu0 0.0
        %481 = vmatmul.mubr.f32.gmra.mrb[0].mxu0 %v237
        %v482 = vpop.f32.mrb[0].mxu0
        %v483 = vadd.f32 %v259, %v482
        %v484 = vpop.f32.mrb[0].mxu0
        %485 = vdwg.mxu0
        %v486 = vtanh.pop %v328
        %v487 = vtanh.pop %v333
        %v488 = vtanh.pop %v338
        %v489 = vtanh.pop %v343
        %v490 = vtanh.pop %v348
        %v491 = vtanh.pop %v353
        %v492 = vtanh.pop %v358
        %v493 = vtanh.pop %v363
        %v494 = vtanh.pop %v368
        %v495 = vtanh.pop %v373
        %v496 = vtanh.pop %v378
        %v497 = vtanh.pop %v383
        %v498 = vtanh.pop %v388
        %v499 = vtanh.pop %v393
        %v500 = vtanh.pop %v398
        %v501 = vtanh.pop %v403
        %v502 = vtanh.pop %v408
        %v503 = vtanh.pop %v413
        %v504 = vtanh.pop %v418
        %v505 = vtanh.pop %v423
        %v506 = vtanh.pop %v428
        %v507 = vtanh.pop %v433
        %v508 = vtanh.pop %v438
        %v509 = vtanh.pop %v443
        %v510 = vtanh.pop %v448
        %v511 = vtanh.pop %v453
        %v512 = vtanh.pop %v458
        %v513 = vtanh.pop %v463
        %v514 = vtanh.pop %v468
        %v515 = vtanh.pop %v473
        %v516 = vtanh.pop %v478
        %v517 = vtanh.pop %v483
        %s518 = scalar_lea.vmem [#allocation5], 128
        %v519 = vld [vmem:[%s518] sm:$0xff]
        %v520 = vld [vmem:[%s518 + $0x8] sm:$0xff]
        %v521 = vld [vmem:[%s518 + $0x10] sm:$0xff]
        %v522 = vld [vmem:[%s518 + $0x18] sm:$0xff]
        %v523 = vld [vmem:[%s518 + $0x20] sm:$0xff]
        %v524 = vld [vmem:[%s518 + $0x28] sm:$0xff]
        %v525 = vld [vmem:[%s518 + $0x30] sm:$0xff]
        %v526 = vld [vmem:[%s518 + $0x38] sm:$0xff]
        %v527 = vld [vmem:[%s518 + $0x40] sm:$0xff]
        %v528 = vld [vmem:[%s518 + $0x48] sm:$0xff]
        %v529 = vld [vmem:[%s518 + $0x50] sm:$0xff]
        %v530 = vld [vmem:[%s518 + $0x58] sm:$0xff]
        %v531 = vld [vmem:[%s518 + $0x60] sm:$0xff]
        %v532 = vld [vmem:[%s518 + $0x68] sm:$0xff]
        %v533 = vld [vmem:[%s518 + $0x70] sm:$0xff]
        %v534 = vld [vmem:[%s518 + $0x78] sm:$0xff]
        %s535 = scalar_lea.vmem %s2, 1
        %v536 = vld [vmem:[%s535] sm:$0x1]
        %v538 = vlaneseq
        %v539 = vshrl.u32 %v538, 7
        %v540 = vsub.s32 0, %v539
        %v541 = vrot.slane %v536, %v540
        %543 = vmatprep.subr.mxu0 0.0
        %544 = vmatpush1.msra.mxu0 %v519
        %545 = vmatprep.subr.mxu0 0.0
        %546 = vmatpush1.msra.mxu0 %v520
        %547 = vmatprep.subr.mxu0 0.0
        %548 = vmatpush1.msra.mxu0 %v521
        %549 = vmatprep.subr.mxu0 0.0
        %550 = vmatpush1.msra.mxu0 %v522
        %551 = vmatprep.subr.mxu0 0.0
        %552 = vmatpush1.msra.mxu0 %v523
        %553 = vmatprep.subr.mxu0 0.0
        %554 = vmatpush1.msra.mxu0 %v524
        %555 = vmatprep.subr.mxu0 0.0
        %556 = vmatpush1.msra.mxu0 %v525
        %557 = vmatprep.subr.mxu0 0.0
        %558 = vmatpush1.msra.mxu0 %v526
        %559 = vmatprep.subr.mxu0 0.0
        %560 = vmatpush1.msra.mxu0 %v527
        %561 = vmatprep.subr.mxu0 0.0
        %562 = vmatpush1.msra.mxu0 %v528
        %563 = vmatprep.subr.mxu0 0.0
        %564 = vmatpush1.msra.mxu0 %v529
        %565 = vmatprep.subr.mxu0 0.0
        %566 = vmatpush1.msra.mxu0 %v530
        %567 = vmatprep.subr.mxu0 0.0
        %568 = vmatpush1.msra.mxu0 %v531
        %569 = vmatprep.subr.mxu0 0.0
        %570 = vmatpush1.msra.mxu0 %v532
        %571 = vmatprep.subr.mxu0 0.0
        %572 = vmatpush1.msra.mxu0 %v533
        %573 = vmatprep.subr.mxu0 0.0
        %574 = vmatpush1.msra.mxu0 %v534
        %575 = vmatprep.subr.mxu0 0.0
        %576 = vmatpush1.msra.mxu0 0.0
        %577 = vmatprep.subr.mxu0 0.0
        %578 = vmatpush1.msra.mxu0 0.0
        %579 = vmatprep.subr.mxu0 0.0
        %580 = vmatpush1.msra.mxu0 0.0
        %581 = vmatprep.subr.mxu0 0.0
        %582 = vmatpush1.msra.mxu0 0.0
        %583 = vmatprep.subr.mxu0 0.0
        %584 = vmatpush1.msra.mxu0 0.0
        %585 = vmatprep.subr.mxu0 0.0
        %586 = vmatpush1.msra.mxu0 0.0
        %587 = vmatprep.subr.mxu0 0.0
        %588 = vmatpush1.msra.mxu0 0.0
        %589 = vmatprep.subr.mxu0 0.0
        %590 = vmatpush1.msra.mxu0 0.0
        %591 = vmatprep.subr.mxu0 0.0
        %592 = vmatpush1.msra.mxu0 0.0
        %593 = vmatprep.subr.mxu0 0.0
        %594 = vmatpush1.msra.mxu0 0.0
        %595 = vmatprep.subr.mxu0 0.0
        %596 = vmatpush1.msra.mxu0 0.0
        %597 = vmatprep.subr.mxu0 0.0
        %598 = vmatpush1.msra.mxu0 0.0
        %599 = vmatprep.subr.mxu0 0.0
        %600 = vmatpush1.msra.mxu0 0.0
        %601 = vmatprep.subr.mxu0 0.0
        %602 = vmatpush1.msra.mxu0 0.0
        %603 = vmatprep.subr.mxu0 0.0
        %604 = vmatpush1.msra.mxu0 0.0
        %605 = vmatprep.subr.mxu0 0.0
        %606 = vmatpush1.msra.mxu0 0.0
        %607 = vmatprep.mubr.f32.mxu0 0.0
        %608 = vmatmul.mubr.f32.gmra.mrb[0].mxu0 %v486
        %v609 = vpop.f32.mrb[0].mxu0
        %v610 = vadd.f32 %v541, %v609
        %v611 = vpop.f32.mrb[0].mxu0
        %612 = vmatprep.mubr.f32.mxu0 0.0
        %613 = vmatmul.mubr.f32.gmra.mrb[0].mxu0 %v487
        %v614 = vpop.f32.mrb[0].mxu0
        %v615 = vadd.f32 %v541, %v614
        %v616 = vpop.f32.mrb[0].mxu0
        %617 = vmatprep.mubr.f32.mxu0 0.0
        %618 = vmatmul.mubr.f32.gmra.mrb[0].mxu0 %v488
        %v619 = vpop.f32.mrb[0].mxu0
        %v620 = vadd.f32 %v541, %v619
        %v621 = vpop.f32.mrb[0].mxu0
        %622 = vmatprep.mubr.f32.mxu0 0.0
        %623 = vmatmul.mubr.f32.gmra.mrb[0].mxu0 %v489
        %v624 = vpop.f32.mrb[0].mxu0
        %v625 = vadd.f32 %v541, %v624
        %v626 = vpop.f32.mrb[0].mxu0
        %627 = vmatprep.mubr.f32.mxu0 0.0
        %628 = vmatmul.mubr.f32.gmra.mrb[0].mxu0 %v490
        %v629 = vpop.f32.mrb[0].mxu0
        %v630 = vadd.f32 %v541, %v629
        %v631 = vpop.f32.mrb[0].mxu0
        %632 = vmatprep.mubr.f32.mxu0 0.0
        %633 = vmatmul.mubr.f32.gmra.mrb[0].mxu0 %v491
        %v634 = vpop.f32.mrb[0].mxu0
        %v635 = vadd.f32 %v541, %v634
        %v636 = vpop.f32.mrb[0].mxu0
        %637 = vmatprep.mubr.f32.mxu0 0.0
        %638 = vmatmul.mubr.f32.gmra.mrb[0].mxu0 %v492
        %v639 = vpop.f32.mrb[0].mxu0
        %v640 = vadd.f32 %v541, %v639
        %v641 = vpop.f32.mrb[0].mxu0
        %642 = vmatprep.mubr.f32.mxu0 0.0
        %643 = vmatmul.mubr.f32.gmra.mrb[0].mxu0 %v493
        %v644 = vpop.f32.mrb[0].mxu0
        %v645 = vadd.f32 %v541, %v644
        %v646 = vpop.f32.mrb[0].mxu0
        %647 = vmatprep.mubr.f32.mxu0 0.0
        %648 = vmatmul.mubr.f32.gmra.mrb[0].mxu0 %v494
        %v649 = vpop.f32.mrb[0].mxu0
        %v650 = vadd.f32 %v541, %v649
        %v651 = vpop.f32.mrb[0].mxu0
        %652 = vmatprep.mubr.f32.mxu0 0.0
        %653 = vmatmul.mubr.f32.gmra.mrb[0].mxu0 %v495
        %v654 = vpop.f32.mrb[0].mxu0
        %v655 = vadd.f32 %v541, %v654
        %v656 = vpop.f32.mrb[0].mxu0
        %657 = vmatprep.mubr.f32.mxu0 0.0
        %658 = vmatmul.mubr.f32.gmra.mrb[0].mxu0 %v496
        %v659 = vpop.f32.mrb[0].mxu0
        %v660 = vadd.f32 %v541, %v659
        %v661 = vpop.f32.mrb[0].mxu0
        %662 = vmatprep.mubr.f32.mxu0 0.0
        %663 = vmatmul.mubr.f32.gmra.mrb[0].mxu0 %v497
        %v664 = vpop.f32.mrb[0].mxu0
        %v665 = vadd.f32 %v541, %v664
        %v666 = vpop.f32.mrb[0].mxu0
        %667 = vmatprep.mubr.f32.mxu0 0.0
        %668 = vmatmul.mubr.f32.gmra.mrb[0].mxu0 %v498
        %v669 = vpop.f32.mrb[0].mxu0
        %v670 = vadd.f32 %v541, %v669
        %v671 = vpop.f32.mrb[0].mxu0
        %672 = vmatprep.mubr.f32.mxu0 0.0
        %673 = vmatmul.mubr.f32.gmra.mrb[0].mxu0 %v499
        %v674 = vpop.f32.mrb[0].mxu0
        %v675 = vadd.f32 %v541, %v674
        %v676 = vpop.f32.mrb[0].mxu0
        %677 = vmatprep.mubr.f32.mxu0 0.0
        %678 = vmatmul.mubr.f32.gmra.mrb[0].mxu0 %v500
        %v679 = vpop.f32.mrb[0].mxu0
        %v680 = vadd.f32 %v541, %v679
        %v681 = vpop.f32.mrb[0].mxu0
        %682 = vmatprep.mubr.f32.mxu0 0.0
        %683 = vmatmul.mubr.f32.gmra.mrb[0].mxu0 %v501
        %v684 = vpop.f32.mrb[0].mxu0
        %v685 = vadd.f32 %v541, %v684
        %v686 = vpop.f32.mrb[0].mxu0
        %687 = vmatprep.mubr.f32.mxu0 0.0
        %688 = vmatmul.mubr.f32.gmra.mrb[0].mxu0 %v502
        %v689 = vpop.f32.mrb[0].mxu0
        %v690 = vadd.f32 %v541, %v689
        %v691 = vpop.f32.mrb[0].mxu0
        %692 = vmatprep.mubr.f32.mxu0 0.0
        %693 = vmatmul.mubr.f32.gmra.mrb[0].mxu0 %v503
        %v694 = vpop.f32.mrb[0].mxu0
        %v695 = vadd.f32 %v541, %v694
        %v696 = vpop.f32.mrb[0].mxu0
        %697 = vmatprep.mubr.f32.mxu0 0.0
        %698 = vmatmul.mubr.f32.gmra.mrb[0].mxu0 %v504
        %v699 = vpop.f32.mrb[0].mxu0
        %v700 = vadd.f32 %v541, %v699
        %v701 = vpop.f32.mrb[0].mxu0
        %702 = vmatprep.mubr.f32.mxu0 0.0
        %703 = vmatmul.mubr.f32.gmra.mrb[0].mxu0 %v505
        %v704 = vpop.f32.mrb[0].mxu0
        %v705 = vadd.f32 %v541, %v704
        %v706 = vpop.f32.mrb[0].mxu0
        %707 = vmatprep.mubr.f32.mxu0 0.0
        %708 = vmatmul.mubr.f32.gmra.mrb[0].mxu0 %v506
        %v709 = vpop.f32.mrb[0].mxu0
        %v710 = vadd.f32 %v541, %v709
        %v711 = vpop.f32.mrb[0].mxu0
        %712 = vmatprep.mubr.f32.mxu0 0.0
        %713 = vmatmul.mubr.f32.gmra.mrb[0].mxu0 %v507
        %v714 = vpop.f32.mrb[0].mxu0
        %v715 = vadd.f32 %v541, %v714
        %v716 = vpop.f32.mrb[0].mxu0
        %717 = vmatprep.mubr.f32.mxu0 0.0
        %718 = vmatmul.mubr.f32.gmra.mrb[0].mxu0 %v508
        %v719 = vpop.f32.mrb[0].mxu0
        %v720 = vadd.f32 %v541, %v719
        %v721 = vpop.f32.mrb[0].mxu0
        %722 = vmatprep.mubr.f32.mxu0 0.0
        %723 = vmatmul.mubr.f32.gmra.mrb[0].mxu0 %v509
        %v724 = vpop.f32.mrb[0].mxu0
        %v725 = vadd.f32 %v541, %v724
        %v726 = vpop.f32.mrb[0].mxu0
        %727 = vmatprep.mubr.f32.mxu0 0.0
        %728 = vmatmul.mubr.f32.gmra.mrb[0].mxu0 %v510
        %v729 = vpop.f32.mrb[0].mxu0
        %v730 = vadd.f32 %v541, %v729
        %v731 = vpop.f32.mrb[0].mxu0
        %732 = vmatprep.mubr.f32.mxu0 0.0
        %733 = vmatmul.mubr.f32.gmra.mrb[0].mxu0 %v511
        %v734 = vpop.f32.mrb[0].mxu0
        %v735 = vadd.f32 %v541, %v734
        %v736 = vpop.f32.mrb[0].mxu0
        %737 = vmatprep.mubr.f32.mxu0 0.0
        %738 = vmatmul.mubr.f32.gmra.mrb[0].mxu0 %v512
        %v739 = vpop.f32.mrb[0].mxu0
        %v740 = vadd.f32 %v541, %v739
        %v741 = vpop.f32.mrb[0].mxu0
        %742 = vmatprep.mubr.f32.mxu0 0.0
        %743 = vmatmul.mubr.f32.gmra.mrb[0].mxu0 %v513
        %v744 = vpop.f32.mrb[0].mxu0
        %v745 = vadd.f32 %v541, %v744
        %v746 = vpop.f32.mrb[0].mxu0
        %747 = vmatprep.mubr.f32.mxu0 0.0
        %748 = vmatmul.mubr.f32.gmra.mrb[0].mxu0 %v514
        %v749 = vpop.f32.mrb[0].mxu0
        %v750 = vadd.f32 %v541, %v749
        %v751 = vpop.f32.mrb[0].mxu0
        %752 = vmatprep.mubr.f32.mxu0 0.0
        %753 = vmatmul.mubr.f32.gmra.mrb[0].mxu0 %v515
        %v754 = vpop.f32.mrb[0].mxu0
        %v755 = vadd.f32 %v541, %v754
        %v756 = vpop.f32.mrb[0].mxu0
        %757 = vmatprep.mubr.f32.mxu0 0.0
        %758 = vmatmul.mubr.f32.gmra.mrb[0].mxu0 %v516
        %v759 = vpop.f32.mrb[0].mxu0
        %v760 = vadd.f32 %v541, %v759
        %v761 = vpop.f32.mrb[0].mxu0
        %762 = vmatprep.mubr.f32.mxu0 0.0
        %763 = vmatmul.mubr.f32.gmra.mrb[0].mxu0 %v517
        %v764 = vpop.f32.mrb[0].mxu0
        %v765 = vadd.f32 %v541, %v764
        %v766 = vpop.f32.mrb[0].mxu0
        %767 = vdwg.mxu0
        %v768 = vtanh.pop %v610
        %v769 = vtanh.pop %v615
        %v770 = vtanh.pop %v620
        %v771 = vtanh.pop %v625
        %v772 = vtanh.pop %v630
        %v773 = vtanh.pop %v635
        %v774 = vtanh.pop %v640
        %v775 = vtanh.pop %v645
        %v776 = vtanh.pop %v650
        %v777 = vtanh.pop %v655
        %v778 = vtanh.pop %v660
        %v779 = vtanh.pop %v665
        %v780 = vtanh.pop %v670
        %v781 = vtanh.pop %v675
        %v782 = vtanh.pop %v680
        %v783 = vtanh.pop %v685
        %v784 = vtanh.pop %v690
        %v785 = vtanh.pop %v695
        %v786 = vtanh.pop %v700
        %v787 = vtanh.pop %v705
        %v788 = vtanh.pop %v710
        %v789 = vtanh.pop %v715
        %v790 = vtanh.pop %v720
        %v791 = vtanh.pop %v725
        %v792 = vtanh.pop %v730
        %v793 = vtanh.pop %v735
        %v794 = vtanh.pop %v740
        %v795 = vtanh.pop %v745
        %v796 = vtanh.pop %v750
        %v797 = vtanh.pop %v755
        %v798 = vtanh.pop %v760
        %v799 = vtanh.pop %v765
        %s800 = scalar_lea.vmem [#allocation5], 256
        %v801 = vld [vmem:[%s800] sm:$0xff]
        %v802 = vld [vmem:[%s800 + $0x8] sm:$0xff]
        %v803 = vld [vmem:[%s800 + $0x10] sm:$0xff]
        %v804 = vld [vmem:[%s800 + $0x18] sm:$0xff]
        %v805 = vld [vmem:[%s800 + $0x20] sm:$0xff]
        %v806 = vld [vmem:[%s800 + $0x28] sm:$0xff]
        %v807 = vld [vmem:[%s800 + $0x30] sm:$0xff]
        %v808 = vld [vmem:[%s800 + $0x38] sm:$0xff]
        %v809 = vld [vmem:[%s800 + $0x40] sm:$0xff]
        %v810 = vld [vmem:[%s800 + $0x48] sm:$0xff]
        %v811 = vld [vmem:[%s800 + $0x50] sm:$0xff]
        %v812 = vld [vmem:[%s800 + $0x58] sm:$0xff]
        %v813 = vld [vmem:[%s800 + $0x60] sm:$0xff]
        %v814 = vld [vmem:[%s800 + $0x68] sm:$0xff]
        %v815 = vld [vmem:[%s800 + $0x70] sm:$0xff]
        %v816 = vld [vmem:[%s800 + $0x78] sm:$0xff]
        %s817 = scalar_lea.vmem %s2, 2
        %v818 = vld [vmem:[%s817] sm:$0x1]
        %v820 = vlaneseq
        %v821 = vshrl.u32 %v820, 7
        %v822 = vsub.s32 0, %v821
        %v823 = vrot.slane %v818, %v822
        %825 = vmatprep.subr.mxu0 0.0
        %826 = vmatpush1.msra.mxu0 %v801
        %827 = vmatprep.subr.mxu0 0.0
        %828 = vmatpush1.msra.mxu0 %v802
        %829 = vmatprep.subr.mxu0 0.0
        %830 = vmatpush1.msra.mxu0 %v803
        %831 = vmatprep.subr.mxu0 0.0
        %832 = vmatpush1.msra.mxu0 %v804
        %833 = vmatprep.subr.mxu0 0.0
        %834 = vmatpush1.msra.mxu0 %v805
        %835 = vmatprep.subr.mxu0 0.0
        %836 = vmatpush1.msra.mxu0 %v806
        %837 = vmatprep.subr.mxu0 0.0
        %838 = vmatpush1.msra.mxu0 %v807
        %839 = vmatprep.subr.mxu0 0.0
        %840 = vmatpush1.msra.mxu0 %v808
        %841 = vmatprep.subr.mxu0 0.0
        %842 = vmatpush1.msra.mxu0 %v809
        %843 = vmatprep.subr.mxu0 0.0
        %844 = vmatpush1.msra.mxu0 %v810
        %845 = vmatprep.subr.mxu0 0.0
        %846 = vmatpush1.msra.mxu0 %v811
        %847 = vmatprep.subr.mxu0 0.0
        %848 = vmatpush1.msra.mxu0 %v812
        %849 = vmatprep.subr.mxu0 0.0
        %850 = vmatpush1.msra.mxu0 %v813
        %851 = vmatprep.subr.mxu0 0.0
        %852 = vmatpush1.msra.mxu0 %v814
        %853 = vmatprep.subr.mxu0 0.0
        %854 = vmatpush1.msra.mxu0 %v815
        %855 = vmatprep.subr.mxu0 0.0
        %856 = vmatpush1.msra.mxu0 %v816
        %857 = vmatprep.subr.mxu0 0.0
        %858 = vmatpush1.msra.mxu0 0.0
        %859 = vmatprep.subr.mxu0 0.0
        %860 = vmatpush1.msra.mxu0 0.0
        %861 = vmatprep.subr.mxu0 0.0
        %862 = vmatpush1.msra.mxu0 0.0
        %863 = vmatprep.subr.mxu0 0.0
        %864 = vmatpush1.msra.mxu0 0.0
        %865 = vmatprep.subr.mxu0 0.0
        %866 = vmatpush1.msra.mxu0 0.0
        %867 = vmatprep.subr.mxu0 0.0
        %868 = vmatpush1.msra.mxu0 0.0
        %869 = vmatprep.subr.mxu0 0.0
        %870 = vmatpush1.msra.mxu0 0.0
        %871 = vmatprep.subr.mxu0 0.0
        %872 = vmatpush1.msra.mxu0 0.0
        %873 = vmatprep.subr.mxu0 0.0
        %874 = vmatpush1.msra.mxu0 0.0
        %875 = vmatprep.subr.mxu0 0.0
        %876 = vmatpush1.msra.mxu0 0.0
        %877 = vmatprep.subr.mxu0 0.0
        %878 = vmatpush1.msra.mxu0 0.0
        %879 = vmatprep.subr.mxu0 0.0
        %880 = vmatpush1.msra.mxu0 0.0
        %881 = vmatprep.subr.mxu0 0.0
        %882 = vmatpush1.msra.mxu0 0.0
        %883 = vmatprep.subr.mxu0 0.0
        %884 = vmatpush1.msra.mxu0 0.0
        %885 = vmatprep.subr.mxu0 0.0
        %886 = vmatpush1.msra.mxu0 0.0
        %887 = vmatprep.subr.mxu0 0.0
        %888 = vmatpush1.msra.mxu0 0.0
        %889 = vmatprep.mubr.f32.mxu0 0.0
        %890 = vmatmul.mubr.f32.gmra.mrb[0].mxu0 %v768
        %v891 = vpop.f32.mrb[0].mxu0
        %v892 = vadd.f32 %v823, %v891
        %v893 = vpop.f32.mrb[0].mxu0
        %894 = vmatprep.mubr.f32.mxu0 0.0
        %895 = vmatmul.mubr.f32.gmra.mrb[0].mxu0 %v769
        %v896 = vpop.f32.mrb[0].mxu0
        %v897 = vadd.f32 %v823, %v896
        %v898 = vpop.f32.mrb[0].mxu0
        %899 = vmatprep.mubr.f32.mxu0 0.0
        %900 = vmatmul.mubr.f32.gmra.mrb[0].mxu0 %v770
        %v901 = vpop.f32.mrb[0].mxu0
        %v902 = vadd.f32 %v823, %v901
        %v903 = vpop.f32.mrb[0].mxu0
        %904 = vmatprep.mubr.f32.mxu0 0.0
        %905 = vmatmul.mubr.f32.gmra.mrb[0].mxu0 %v771
        %v906 = vpop.f32.mrb[0].mxu0
        %v907 = vadd.f32 %v823, %v906
        %v908 = vpop.f32.mrb[0].mxu0
        %909 = vmatprep.mubr.f32.mxu0 0.0
        %910 = vmatmul.mubr.f32.gmra.mrb[0].mxu0 %v772
        %v911 = vpop.f32.mrb[0].mxu0
        %v912 = vadd.f32 %v823, %v911
        %v913 = vpop.f32.mrb[0].mxu0
        %914 = vmatprep.mubr.f32.mxu0 0.0
        %915 = vmatmul.mubr.f32.gmra.mrb[0].mxu0 %v773
        %v916 = vpop.f32.mrb[0].mxu0
        %v917 = vadd.f32 %v823, %v916
        %v918 = vpop.f32.mrb[0].mxu0
        %919 = vmatprep.mubr.f32.mxu0 0.0
        %920 = vmatmul.mubr.f32.gmra.mrb[0].mxu0 %v774
        %v921 = vpop.f32.mrb[0].mxu0
        %v922 = vadd.f32 %v823, %v921
        %v923 = vpop.f32.mrb[0].mxu0
        %924 = vmatprep.mubr.f32.mxu0 0.0
        %925 = vmatmul.mubr.f32.gmra.mrb[0].mxu0 %v775
        %v926 = vpop.f32.mrb[0].mxu0
        %v927 = vadd.f32 %v823, %v926
        %v928 = vpop.f32.mrb[0].mxu0
        %929 = vmatprep.mubr.f32.mxu0 0.0
        %930 = vmatmul.mubr.f32.gmra.mrb[0].mxu0 %v776
        %v931 = vpop.f32.mrb[0].mxu0
        %v932 = vadd.f32 %v823, %v931
        %v933 = vpop.f32.mrb[0].mxu0
        %934 = vmatprep.mubr.f32.mxu0 0.0
        %935 = vmatmul.mubr.f32.gmra.mrb[0].mxu0 %v777
        %v936 = vpop.f32.mrb[0].mxu0
        %v937 = vadd.f32 %v823, %v936
        %v938 = vpop.f32.mrb[0].mxu0
        %939 = vmatprep.mubr.f32.mxu0 0.0
        %940 = vmatmul.mubr.f32.gmra.mrb[0].mxu0 %v778
        %v941 = vpop.f32.mrb[0].mxu0
        %v942 = vadd.f32 %v823, %v941
        %v943 = vpop.f32.mrb[0].mxu0
        %944 = vmatprep.mubr.f32.mxu0 0.0
        %945 = vmatmul.mubr.f32.gmra.mrb[0].mxu0 %v779
        %v946 = vpop.f32.mrb[0].mxu0
        %v947 = vadd.f32 %v823, %v946
        %v948 = vpop.f32.mrb[0].mxu0
        %949 = vmatprep.mubr.f32.mxu0 0.0
        %950 = vmatmul.mubr.f32.gmra.mrb[0].mxu0 %v780
        %v951 = vpop.f32.mrb[0].mxu0
        %v952 = vadd.f32 %v823, %v951
        %v953 = vpop.f32.mrb[0].mxu0
        %954 = vmatprep.mubr.f32.mxu0 0.0
        %955 = vmatmul.mubr.f32.gmra.mrb[0].mxu0 %v781
        %v956 = vpop.f32.mrb[0].mxu0
        %v957 = vadd.f32 %v823, %v956
        %v958 = vpop.f32.mrb[0].mxu0
        %959 = vmatprep.mubr.f32.mxu0 0.0
        %960 = vmatmul.mubr.f32.gmra.mrb[0].mxu0 %v782
        %v961 = vpop.f32.mrb[0].mxu0
        %v962 = vadd.f32 %v823, %v961
        %v963 = vpop.f32.mrb[0].mxu0
        %964 = vmatprep.mubr.f32.mxu0 0.0
        %965 = vmatmul.mubr.f32.gmra.mrb[0].mxu0 %v783
        %v966 = vpop.f32.mrb[0].mxu0
        %v967 = vadd.f32 %v823, %v966
        %v968 = vpop.f32.mrb[0].mxu0
        %969 = vmatprep.mubr.f32.mxu0 0.0
        %970 = vmatmul.mubr.f32.gmra.mrb[0].mxu0 %v784
        %v971 = vpop.f32.mrb[0].mxu0
        %v972 = vadd.f32 %v823, %v971
        %v973 = vpop.f32.mrb[0].mxu0
        %974 = vmatprep.mubr.f32.mxu0 0.0
        %975 = vmatmul.mubr.f32.gmra.mrb[0].mxu0 %v785
        %v976 = vpop.f32.mrb[0].mxu0
        %v977 = vadd.f32 %v823, %v976
        %v978 = vpop.f32.mrb[0].mxu0
        %979 = vmatprep.mubr.f32.mxu0 0.0
        %980 = vmatmul.mubr.f32.gmra.mrb[0].mxu0 %v786
        %v981 = vpop.f32.mrb[0].mxu0
        %v982 = vadd.f32 %v823, %v981
        %v983 = vpop.f32.mrb[0].mxu0
        %984 = vmatprep.mubr.f32.mxu0 0.0
        %985 = vmatmul.mubr.f32.gmra.mrb[0].mxu0 %v787
        %v986 = vpop.f32.mrb[0].mxu0
        %v987 = vadd.f32 %v823, %v986
        %v988 = vpop.f32.mrb[0].mxu0
        %989 = vmatprep.mubr.f32.mxu0 0.0
        %990 = vmatmul.mubr.f32.gmra.mrb[0].mxu0 %v788
        %v991 = vpop.f32.mrb[0].mxu0
        %v992 = vadd.f32 %v823, %v991
        %v993 = vpop.f32.mrb[0].mxu0
        %994 = vmatprep.mubr.f32.mxu0 0.0
        %995 = vmatmul.mubr.f32.gmra.mrb[0].mxu0 %v789
        %v996 = vpop.f32.mrb[0].mxu0
        %v997 = vadd.f32 %v823, %v996
        %v998 = vpop.f32.mrb[0].mxu0
        %999 = vmatprep.mubr.f32.mxu0 0.0
        %1000 = vmatmul.mubr.f32.gmra.mrb[0].mxu0 %v790
        %v1001 = vpop.f32.mrb[0].mxu0
        %v1002 = vadd.f32 %v823, %v1001
        %v1003 = vpop.f32.mrb[0].mxu0
        %1004 = vmatprep.mubr.f32.mxu0 0.0
        %1005 = vmatmul.mubr.f32.gmra.mrb[0].mxu0 %v791
        %v1006 = vpop.f32.mrb[0].mxu0
        %v1007 = vadd.f32 %v823, %v1006
        %v1008 = vpop.f32.mrb[0].mxu0
        %1009 = vmatprep.mubr.f32.mxu0 0.0
        %1010 = vmatmul.mubr.f32.gmra.mrb[0].mxu0 %v792
        %v1011 = vpop.f32.mrb[0].mxu0
        %v1012 = vadd.f32 %v823, %v1011
        %v1013 = vpop.f32.mrb[0].mxu0
        %1014 = vmatprep.mubr.f32.mxu0 0.0
        %1015 = vmatmul.mubr.f32.gmra.mrb[0].mxu0 %v793
        %v1016 = vpop.f32.mrb[0].mxu0
        %v1017 = vadd.f32 %v823, %v1016
        %v1018 = vpop.f32.mrb[0].mxu0
        %1019 = vmatprep.mubr.f32.mxu0 0.0
        %1020 = vmatmul.mubr.f32.gmra.mrb[0].mxu0 %v794
        %v1021 = vpop.f32.mrb[0].mxu0
        %v1022 = vadd.f32 %v823, %v1021
        %v1023 = vpop.f32.mrb[0].mxu0
        %1024 = vmatprep.mubr.f32.mxu0 0.0
        %1025 = vmatmul.mubr.f32.gmra.mrb[0].mxu0 %v795
        %v1026 = vpop.f32.mrb[0].mxu0
        %v1027 = vadd.f32 %v823, %v1026
        %v1028 = vpop.f32.mrb[0].mxu0
        %1029 = vmatprep.mubr.f32.mxu0 0.0
        %1030 = vmatmul.mubr.f32.gmra.mrb[0].mxu0 %v796
        %v1031 = vpop.f32.mrb[0].mxu0
        %v1032 = vadd.f32 %v823, %v1031
        %v1033 = vpop.f32.mrb[0].mxu0
        %1034 = vmatprep.mubr.f32.mxu0 0.0
        %1035 = vmatmul.mubr.f32.gmra.mrb[0].mxu0 %v797
        %v1036 = vpop.f32.mrb[0].mxu0
        %v1037 = vadd.f32 %v823, %v1036
        %v1038 = vpop.f32.mrb[0].mxu0
        %1039 = vmatprep.mubr.f32.mxu0 0.0
        %1040 = vmatmul.mubr.f32.gmra.mrb[0].mxu0 %v798
        %v1041 = vpop.f32.mrb[0].mxu0
        %v1042 = vadd.f32 %v823, %v1041
        %v1043 = vpop.f32.mrb[0].mxu0
        %1044 = vmatprep.mubr.f32.mxu0 0.0
        %1045 = vmatmul.mubr.f32.gmra.mrb[0].mxu0 %v799
        %v1046 = vpop.f32.mrb[0].mxu0
        %v1047 = vadd.f32 %v823, %v1046
        %v1048 = vpop.f32.mrb[0].mxu0
        %1049 = vdwg.mxu0
        %s1050 = scalar_lea.vmem [#allocation5], 384
        %v1051 = vld [vmem:[%s1050] sm:$0xff]
        %v1052 = vld [vmem:[%s1050 + $0x8] sm:$0xff]
        %v1053 = vld [vmem:[%s1050 + $0x10] sm:$0xff]
        %v1054 = vld [vmem:[%s1050 + $0x18] sm:$0xff]
        %v1055 = vld [vmem:[%s1050 + $0x20] sm:$0xff]
        %v1056 = vld [vmem:[%s1050 + $0x28] sm:$0xff]
        %v1057 = vld [vmem:[%s1050 + $0x30] sm:$0xff]
        %v1058 = vld [vmem:[%s1050 + $0x38] sm:$0xff]
        %v1059 = vld [vmem:[%s1050 + $0x40] sm:$0xff]
        %v1060 = vld [vmem:[%s1050 + $0x48] sm:$0xff]
        %v1061 = vld [vmem:[%s1050 + $0x50] sm:$0xff]
        %v1062 = vld [vmem:[%s1050 + $0x58] sm:$0xff]
        %v1063 = vld [vmem:[%s1050 + $0x60] sm:$0xff]
        %v1064 = vld [vmem:[%s1050 + $0x68] sm:$0xff]
        %v1065 = vld [vmem:[%s1050 + $0x70] sm:$0xff]
        %v1066 = vld [vmem:[%s1050 + $0x78] sm:$0xff]
        %s1067 = scalar_lea.vmem %s2, 3
        %v1068 = vld [vmem:[%s1067] sm:$0x1]
        %v1070 = vlaneseq
        %v1071 = vshrl.u32 %v1070, 7
        %v1072 = vsub.s32 0, %v1071
        %v1073 = vrot.slane %v1068, %v1072
        %1075 = vmatprep.subr.mxu0 0.0
        %1076 = vmatpush1.msra.mxu0 %v1051
        %1077 = vmatprep.subr.mxu0 0.0
        %1078 = vmatpush1.msra.mxu0 %v1052
        %1079 = vmatprep.subr.mxu0 0.0
        %1080 = vmatpush1.msra.mxu0 %v1053
        %1081 = vmatprep.subr.mxu0 0.0
        %1082 = vmatpush1.msra.mxu0 %v1054
        %1083 = vmatprep.subr.mxu0 0.0
        %1084 = vmatpush1.msra.mxu0 %v1055
        %1085 = vmatprep.subr.mxu0 0.0
        %1086 = vmatpush1.msra.mxu0 %v1056
        %1087 = vmatprep.subr.mxu0 0.0
        %1088 = vmatpush1.msra.mxu0 %v1057
        %1089 = vmatprep.subr.mxu0 0.0
        %1090 = vmatpush1.msra.mxu0 %v1058
        %1091 = vmatprep.subr.mxu0 0.0
        %1092 = vmatpush1.msra.mxu0 %v1059
        %1093 = vmatprep.subr.mxu0 0.0
        %1094 = vmatpush1.msra.mxu0 %v1060
        %1095 = vmatprep.subr.mxu0 0.0
        %1096 = vmatpush1.msra.mxu0 %v1061
        %1097 = vmatprep.subr.mxu0 0.0
        %1098 = vmatpush1.msra.mxu0 %v1062
        %1099 = vmatprep.subr.mxu0 0.0
        %1100 = vmatpush1.msra.mxu0 %v1063
        %1101 = vmatprep.subr.mxu0 0.0
        %1102 = vmatpush1.msra.mxu0 %v1064
        %1103 = vmatprep.subr.mxu0 0.0
        %1104 = vmatpush1.msra.mxu0 %v1065
        %1105 = vmatprep.subr.mxu0 0.0
        %1106 = vmatpush1.msra.mxu0 %v1066
        %1107 = vmatprep.subr.mxu0 0.0
        %1108 = vmatpush1.msra.mxu0 0.0
        %1109 = vmatprep.subr.mxu0 0.0
        %1110 = vmatpush1.msra.mxu0 0.0
        %1111 = vmatprep.subr.mxu0 0.0
        %1112 = vmatpush1.msra.mxu0 0.0
        %1113 = vmatprep.subr.mxu0 0.0
        %1114 = vmatpush1.msra.mxu0 0.0
        %1115 = vmatprep.subr.mxu0 0.0
        %1116 = vmatpush1.msra.mxu0 0.0
        %1117 = vmatprep.subr.mxu0 0.0
        %1118 = vmatpush1.msra.mxu0 0.0
        %1119 = vmatprep.subr.mxu0 0.0
        %1120 = vmatpush1.msra.mxu0 0.0
        %1121 = vmatprep.subr.mxu0 0.0
        %1122 = vmatpush1.msra.mxu0 0.0
        %1123 = vmatprep.subr.mxu0 0.0
        %1124 = vmatpush1.msra.mxu0 0.0
        %1125 = vmatprep.subr.mxu0 0.0
        %1126 = vmatpush1.msra.mxu0 0.0
        %1127 = vmatprep.subr.mxu0 0.0
        %1128 = vmatpush1.msra.mxu0 0.0
        %1129 = vmatprep.subr.mxu0 0.0
        %1130 = vmatpush1.msra.mxu0 0.0
        %1131 = vmatprep.subr.mxu0 0.0
        %1132 = vmatpush1.msra.mxu0 0.0
        %1133 = vmatprep.subr.mxu0 0.0
        %1134 = vmatpush1.msra.mxu0 0.0
        %1135 = vmatprep.subr.mxu0 0.0
        %1136 = vmatpush1.msra.mxu0 0.0
        %1137 = vmatprep.subr.mxu0 0.0
        %1138 = vmatpush1.msra.mxu0 0.0
        %1139 = vmatprep.mubr.f32.mxu0 0.0
        %1140 = vmatmul.mubr.f32.gmra.mrb[0].mxu0 %v892
        %v1141 = vpop.f32.mrb[0].mxu0
        %v1142 = vadd.f32 %v1073, %v1141
        %v1143 = vpop.f32.mrb[0].mxu0
        %1144 = vmatprep.mubr.f32.mxu0 0.0
        %1145 = vmatmul.mubr.f32.gmra.mrb[0].mxu0 %v897
        %v1146 = vpop.f32.mrb[0].mxu0
        %v1147 = vadd.f32 %v1073, %v1146
        %v1148 = vpop.f32.mrb[0].mxu0
        %1149 = vmatprep.mubr.f32.mxu0 0.0
        %1150 = vmatmul.mubr.f32.gmra.mrb[0].mxu0 %v902
        %v1151 = vpop.f32.mrb[0].mxu0
        %v1152 = vadd.f32 %v1073, %v1151
        %v1153 = vpop.f32.mrb[0].mxu0
        %1154 = vmatprep.mubr.f32.mxu0 0.0
        %1155 = vmatmul.mubr.f32.gmra.mrb[0].mxu0 %v907
        %v1156 = vpop.f32.mrb[0].mxu0
        %v1157 = vadd.f32 %v1073, %v1156
        %v1158 = vpop.f32.mrb[0].mxu0
        %1159 = vmatprep.mubr.f32.mxu0 0.0
        %1160 = vmatmul.mubr.f32.gmra.mrb[0].mxu0 %v912
        %v1161 = vpop.f32.mrb[0].mxu0
        %v1162 = vadd.f32 %v1073, %v1161
        %v1163 = vpop.f32.mrb[0].mxu0
        %1164 = vmatprep.mubr.f32.mxu0 0.0
        %1165 = vmatmul.mubr.f32.gmra.mrb[0].mxu0 %v917
        %v1166 = vpop.f32.mrb[0].mxu0
        %v1167 = vadd.f32 %v1073, %v1166
        %v1168 = vpop.f32.mrb[0].mxu0
        %1169 = vmatprep.mubr.f32.mxu0 0.0
        %1170 = vmatmul.mubr.f32.gmra.mrb[0].mxu0 %v922
        %v1171 = vpop.f32.mrb[0].mxu0
        %v1172 = vadd.f32 %v1073, %v1171
        %v1173 = vpop.f32.mrb[0].mxu0
        %1174 = vmatprep.mubr.f32.mxu0 0.0
        %1175 = vmatmul.mubr.f32.gmra.mrb[0].mxu0 %v927
        %v1176 = vpop.f32.mrb[0].mxu0
        %v1177 = vadd.f32 %v1073, %v1176
        %v1178 = vpop.f32.mrb[0].mxu0
        %1179 = vmatprep.mubr.f32.mxu0 0.0
        %1180 = vmatmul.mubr.f32.gmra.mrb[0].mxu0 %v932
        %v1181 = vpop.f32.mrb[0].mxu0
        %v1182 = vadd.f32 %v1073, %v1181
        %v1183 = vpop.f32.mrb[0].mxu0
        %1184 = vmatprep.mubr.f32.mxu0 0.0
        %1185 = vmatmul.mubr.f32.gmra.mrb[0].mxu0 %v937
        %v1186 = vpop.f32.mrb[0].mxu0
        %v1187 = vadd.f32 %v1073, %v1186
        %v1188 = vpop.f32.mrb[0].mxu0
        %1189 = vmatprep.mubr.f32.mxu0 0.0
        %1190 = vmatmul.mubr.f32.gmra.mrb[0].mxu0 %v942
        %v1191 = vpop.f32.mrb[0].mxu0
        %v1192 = vadd.f32 %v1073, %v1191
        %v1193 = vpop.f32.mrb[0].mxu0
        %1194 = vmatprep.mubr.f32.mxu0 0.0
        %1195 = vmatmul.mubr.f32.gmra.mrb[0].mxu0 %v947
        %v1196 = vpop.f32.mrb[0].mxu0
        %v1197 = vadd.f32 %v1073, %v1196
        %v1198 = vpop.f32.mrb[0].mxu0
        %1199 = vmatprep.mubr.f32.mxu0 0.0
        %1200 = vmatmul.mubr.f32.gmra.mrb[0].mxu0 %v952
        %v1201 = vpop.f32.mrb[0].mxu0
        %v1202 = vadd.f32 %v1073, %v1201
        %v1203 = vpop.f32.mrb[0].mxu0
        %1204 = vmatprep.mubr.f32.mxu0 0.0
        %1205 = vmatmul.mubr.f32.gmra.mrb[0].mxu0 %v957
        %v1206 = vpop.f32.mrb[0].mxu0
        %v1207 = vadd.f32 %v1073, %v1206
        %v1208 = vpop.f32.mrb[0].mxu0
        %1209 = vmatprep.mubr.f32.mxu0 0.0
        %1210 = vmatmul.mubr.f32.gmra.mrb[0].mxu0 %v962
        %v1211 = vpop.f32.mrb[0].mxu0
        %v1212 = vadd.f32 %v1073, %v1211
        %v1213 = vpop.f32.mrb[0].mxu0
        %1214 = vmatprep.mubr.f32.mxu0 0.0
        %1215 = vmatmul.mubr.f32.gmra.mrb[0].mxu0 %v967
        %v1216 = vpop.f32.mrb[0].mxu0
        %v1217 = vadd.f32 %v1073, %v1216
        %v1218 = vpop.f32.mrb[0].mxu0
        %1219 = vmatprep.mubr.f32.mxu0 0.0
        %1220 = vmatmul.mubr.f32.gmra.mrb[0].mxu0 %v972
        %v1221 = vpop.f32.mrb[0].mxu0
        %v1222 = vadd.f32 %v1073, %v1221
        %v1223 = vpop.f32.mrb[0].mxu0
        %1224 = vmatprep.mubr.f32.mxu0 0.0
        %1225 = vmatmul.mubr.f32.gmra.mrb[0].mxu0 %v977
        %v1226 = vpop.f32.mrb[0].mxu0
        %v1227 = vadd.f32 %v1073, %v1226
        %v1228 = vpop.f32.mrb[0].mxu0
        %1229 = vmatprep.mubr.f32.mxu0 0.0
        %1230 = vmatmul.mubr.f32.gmra.mrb[0].mxu0 %v982
        %v1231 = vpop.f32.mrb[0].mxu0
        %v1232 = vadd.f32 %v1073, %v1231
        %v1233 = vpop.f32.mrb[0].mxu0
        %1234 = vmatprep.mubr.f32.mxu0 0.0
        %1235 = vmatmul.mubr.f32.gmra.mrb[0].mxu0 %v987
        %v1236 = vpop.f32.mrb[0].mxu0
        %v1237 = vadd.f32 %v1073, %v1236
        %v1238 = vpop.f32.mrb[0].mxu0
        %1239 = vmatprep.mubr.f32.mxu0 0.0
        %1240 = vmatmul.mubr.f32.gmra.mrb[0].mxu0 %v992
        %v1241 = vpop.f32.mrb[0].mxu0
        %v1242 = vadd.f32 %v1073, %v1241
        %v1243 = vpop.f32.mrb[0].mxu0
        %1244 = vmatprep.mubr.f32.mxu0 0.0
        %1245 = vmatmul.mubr.f32.gmra.mrb[0].mxu0 %v997
        %v1246 = vpop.f32.mrb[0].mxu0
        %v1247 = vadd.f32 %v1073, %v1246
        %v1248 = vpop.f32.mrb[0].mxu0
        %1249 = vmatprep.mubr.f32.mxu0 0.0
        %1250 = vmatmul.mubr.f32.gmra.mrb[0].mxu0 %v1002
        %v1251 = vpop.f32.mrb[0].mxu0
        %v1252 = vadd.f32 %v1073, %v1251
        %v1253 = vpop.f32.mrb[0].mxu0
        %1254 = vmatprep.mubr.f32.mxu0 0.0
        %1255 = vmatmul.mubr.f32.gmra.mrb[0].mxu0 %v1007
        %v1256 = vpop.f32.mrb[0].mxu0
        %v1257 = vadd.f32 %v1073, %v1256
        %v1258 = vpop.f32.mrb[0].mxu0
        %1259 = vmatprep.mubr.f32.mxu0 0.0
        %1260 = vmatmul.mubr.f32.gmra.mrb[0].mxu0 %v1012
        %v1261 = vpop.f32.mrb[0].mxu0
        %v1262 = vadd.f32 %v1073, %v1261
        %v1263 = vpop.f32.mrb[0].mxu0
        %1264 = vmatprep.mubr.f32.mxu0 0.0
        %1265 = vmatmul.mubr.f32.gmra.mrb[0].mxu0 %v1017
        %v1266 = vpop.f32.mrb[0].mxu0
        %v1267 = vadd.f32 %v1073, %v1266
        %v1268 = vpop.f32.mrb[0].mxu0
        %1269 = vmatprep.mubr.f32.mxu0 0.0
        %1270 = vmatmul.mubr.f32.gmra.mrb[0].mxu0 %v1022
        %v1271 = vpop.f32.mrb[0].mxu0
        %v1272 = vadd.f32 %v1073, %v1271
        %v1273 = vpop.f32.mrb[0].mxu0
        %1274 = vmatprep.mubr.f32.mxu0 0.0
        %1275 = vmatmul.mubr.f32.gmra.mrb[0].mxu0 %v1027
        %v1276 = vpop.f32.mrb[0].mxu0
        %v1277 = vadd.f32 %v1073, %v1276
        %v1278 = vpop.f32.mrb[0].mxu0
        %1279 = vmatprep.mubr.f32.mxu0 0.0
        %1280 = vmatmul.mubr.f32.gmra.mrb[0].mxu0 %v1032
        %v1281 = vpop.f32.mrb[0].mxu0
        %v1282 = vadd.f32 %v1073, %v1281
        %v1283 = vpop.f32.mrb[0].mxu0
        %1284 = vmatprep.mubr.f32.mxu0 0.0
        %1285 = vmatmul.mubr.f32.gmra.mrb[0].mxu0 %v1037
        %v1286 = vpop.f32.mrb[0].mxu0
        %v1287 = vadd.f32 %v1073, %v1286
        %v1288 = vpop.f32.mrb[0].mxu0
        %1289 = vmatprep.mubr.f32.mxu0 0.0
        %1290 = vmatmul.mubr.f32.gmra.mrb[0].mxu0 %v1042
        %v1291 = vpop.f32.mrb[0].mxu0
        %v1292 = vadd.f32 %v1073, %v1291
        %v1293 = vpop.f32.mrb[0].mxu0
        %1294 = vmatprep.mubr.f32.mxu0 0.0
        %1295 = vmatmul.mubr.f32.gmra.mrb[0].mxu0 %v1047
        %v1296 = vpop.f32.mrb[0].mxu0
        %v1297 = vadd.f32 %v1073, %v1296
        %v1298 = vpop.f32.mrb[0].mxu0
        %1299 = vdwg.mxu0
        %v1300 = vtanh.pop %v1142
        %v1301 = vtanh.pop %v1147
        %v1302 = vtanh.pop %v1152
        %v1303 = vtanh.pop %v1157
        %v1304 = vtanh.pop %v1162
        %v1305 = vtanh.pop %v1167
        %v1306 = vtanh.pop %v1172
        %v1307 = vtanh.pop %v1177
        %v1308 = vtanh.pop %v1182
        %v1309 = vtanh.pop %v1187
        %v1310 = vtanh.pop %v1192
        %v1311 = vtanh.pop %v1197
        %v1312 = vtanh.pop %v1202
        %v1313 = vtanh.pop %v1207
        %v1314 = vtanh.pop %v1212
        %v1315 = vtanh.pop %v1217
        %v1316 = vtanh.pop %v1222
        %v1317 = vtanh.pop %v1227
        %v1318 = vtanh.pop %v1232
        %v1319 = vtanh.pop %v1237
        %v1320 = vtanh.pop %v1242
        %v1321 = vtanh.pop %v1247
        %v1322 = vtanh.pop %v1252
        %v1323 = vtanh.pop %v1257
        %v1324 = vtanh.pop %v1262
        %v1325 = vtanh.pop %v1267
        %v1326 = vtanh.pop %v1272
        %v1327 = vtanh.pop %v1277
        %v1328 = vtanh.pop %v1282
        %v1329 = vtanh.pop %v1287
        %v1330 = vtanh.pop %v1292
        %v1331 = vtanh.pop %v1297
        %s1332 = scalar_lea.vmem [#allocation5], 512
        %v1333 = vld [vmem:[%s1332] sm:$0xff]
        %v1334 = vld [vmem:[%s1332 + $0x8] sm:$0xff]
        %v1335 = vld [vmem:[%s1332 + $0x10] sm:$0xff]
        %v1336 = vld [vmem:[%s1332 + $0x18] sm:$0xff]
        %v1337 = vld [vmem:[%s1332 + $0x20] sm:$0xff]
        %v1338 = vld [vmem:[%s1332 + $0x28] sm:$0xff]
        %v1339 = vld [vmem:[%s1332 + $0x30] sm:$0xff]
        %v1340 = vld [vmem:[%s1332 + $0x38] sm:$0xff]
        %v1341 = vld [vmem:[%s1332 + $0x40] sm:$0xff]
        %v1342 = vld [vmem:[%s1332 + $0x48] sm:$0xff]
        %v1343 = vld [vmem:[%s1332 + $0x50] sm:$0xff]
        %v1344 = vld [vmem:[%s1332 + $0x58] sm:$0xff]
        %v1345 = vld [vmem:[%s1332 + $0x60] sm:$0xff]
        %v1346 = vld [vmem:[%s1332 + $0x68] sm:$0xff]
        %v1347 = vld [vmem:[%s1332 + $0x70] sm:$0xff]
        %v1348 = vld [vmem:[%s1332 + $0x78] sm:$0xff]
        %s1349 = scalar_lea.vmem %s2, 4
        %v1350 = vld [vmem:[%s1349] sm:$0x1]
        %v1352 = vlaneseq
        %v1353 = vshrl.u32 %v1352, 7
        %v1354 = vsub.s32 0, %v1353
        %v1355 = vrot.slane %v1350, %v1354
        %1357 = vmatprep.subr.mxu0 0.0
        %1358 = vmatpush1.msra.mxu0 %v1333
        %1359 = vmatprep.subr.mxu0 0.0
        %1360 = vmatpush1.msra.mxu0 %v1334
        %1361 = vmatprep.subr.mxu0 0.0
        %1362 = vmatpush1.msra.mxu0 %v1335
        %1363 = vmatprep.subr.mxu0 0.0
        %1364 = vmatpush1.msra.mxu0 %v1336
        %1365 = vmatprep.subr.mxu0 0.0
        %1366 = vmatpush1.msra.mxu0 %v1337
        %1367 = vmatprep.subr.mxu0 0.0
        %1368 = vmatpush1.msra.mxu0 %v1338
        %1369 = vmatprep.subr.mxu0 0.0
        %1370 = vmatpush1.msra.mxu0 %v1339
        %1371 = vmatprep.subr.mxu0 0.0
        %1372 = vmatpush1.msra.mxu0 %v1340
        %1373 = vmatprep.subr.mxu0 0.0
        %1374 = vmatpush1.msra.mxu0 %v1341
        %1375 = vmatprep.subr.mxu0 0.0
        %1376 = vmatpush1.msra.mxu0 %v1342
        %1377 = vmatprep.subr.mxu0 0.0
        %1378 = vmatpush1.msra.mxu0 %v1343
        %1379 = vmatprep.subr.mxu0 0.0
        %1380 = vmatpush1.msra.mxu0 %v1344
        %1381 = vmatprep.subr.mxu0 0.0
        %1382 = vmatpush1.msra.mxu0 %v1345
        %1383 = vmatprep.subr.mxu0 0.0
        %1384 = vmatpush1.msra.mxu0 %v1346
        %1385 = vmatprep.subr.mxu0 0.0
        %1386 = vmatpush1.msra.mxu0 %v1347
        %1387 = vmatprep.subr.mxu0 0.0
        %1388 = vmatpush1.msra.mxu0 %v1348
        %1389 = vmatprep.subr.mxu0 0.0
        %1390 = vmatpush1.msra.mxu0 0.0
        %1391 = vmatprep.subr.mxu0 0.0
        %1392 = vmatpush1.msra.mxu0 0.0
        %1393 = vmatprep.subr.mxu0 0.0
        %1394 = vmatpush1.msra.mxu0 0.0
        %1395 = vmatprep.subr.mxu0 0.0
        %1396 = vmatpush1.msra.mxu0 0.0
        %1397 = vmatprep.subr.mxu0 0.0
        %1398 = vmatpush1.msra.mxu0 0.0
        %1399 = vmatprep.subr.mxu0 0.0
        %1400 = vmatpush1.msra.mxu0 0.0
        %1401 = vmatprep.subr.mxu0 0.0
        %1402 = vmatpush1.msra.mxu0 0.0
        %1403 = vmatprep.subr.mxu0 0.0
        %1404 = vmatpush1.msra.mxu0 0.0
        %1405 = vmatprep.subr.mxu0 0.0
        %1406 = vmatpush1.msra.mxu0 0.0
        %1407 = vmatprep.subr.mxu0 0.0
        %1408 = vmatpush1.msra.mxu0 0.0
        %1409 = vmatprep.subr.mxu0 0.0
        %1410 = vmatpush1.msra.mxu0 0.0
        %1411 = vmatprep.subr.mxu0 0.0
        %1412 = vmatpush1.msra.mxu0 0.0
        %1413 = vmatprep.subr.mxu0 0.0
        %1414 = vmatpush1.msra.mxu0 0.0
        %1415 = vmatprep.subr.mxu0 0.0
        %1416 = vmatpush1.msra.mxu0 0.0
        %1417 = vmatprep.subr.mxu0 0.0
        %1418 = vmatpush1.msra.mxu0 0.0
        %1419 = vmatprep.subr.mxu0 0.0
        %1420 = vmatpush1.msra.mxu0 0.0
        %1421 = vmatprep.mubr.f32.mxu0 0.0
        %1422 = vmatmul.mubr.f32.gmra.mrb[0].mxu0 %v1300
        %v1423 = vpop.f32.mrb[0].mxu0
        %v1424 = vadd.f32 %v1355, %v1423
        %v1425 = vpop.f32.mrb[0].mxu0
        %1426 = vmatprep.mubr.f32.mxu0 0.0
        %1427 = vmatmul.mubr.f32.gmra.mrb[0].mxu0 %v1301
        %v1428 = vpop.f32.mrb[0].mxu0
        %v1429 = vadd.f32 %v1355, %v1428
        %v1430 = vpop.f32.mrb[0].mxu0
        %1431 = vmatprep.mubr.f32.mxu0 0.0
        %1432 = vmatmul.mubr.f32.gmra.mrb[0].mxu0 %v1302
        %v1433 = vpop.f32.mrb[0].mxu0
        %v1434 = vadd.f32 %v1355, %v1433
        %v1435 = vpop.f32.mrb[0].mxu0
        %1436 = vmatprep.mubr.f32.mxu0 0.0
        %1437 = vmatmul.mubr.f32.gmra.mrb[0].mxu0 %v1303
        %v1438 = vpop.f32.mrb[0].mxu0
        %v1439 = vadd.f32 %v1355, %v1438
        %v1440 = vpop.f32.mrb[0].mxu0
        %1441 = vmatprep.mubr.f32.mxu0 0.0
        %1442 = vmatmul.mubr.f32.gmra.mrb[0].mxu0 %v1304
        %v1443 = vpop.f32.mrb[0].mxu0
        %v1444 = vadd.f32 %v1355, %v1443
        %v1445 = vpop.f32.mrb[0].mxu0
        %1446 = vmatprep.mubr.f32.mxu0 0.0
        %1447 = vmatmul.mubr.f32.gmra.mrb[0].mxu0 %v1305
        %v1448 = vpop.f32.mrb[0].mxu0
        %v1449 = vadd.f32 %v1355, %v1448
        %v1450 = vpop.f32.mrb[0].mxu0
        %1451 = vmatprep.mubr.f32.mxu0 0.0
        %1452 = vmatmul.mubr.f32.gmra.mrb[0].mxu0 %v1306
        %v1453 = vpop.f32.mrb[0].mxu0
        %v1454 = vadd.f32 %v1355, %v1453
        %v1455 = vpop.f32.mrb[0].mxu0
        %1456 = vmatprep.mubr.f32.mxu0 0.0
        %1457 = vmatmul.mubr.f32.gmra.mrb[0].mxu0 %v1307
        %v1458 = vpop.f32.mrb[0].mxu0
        %v1459 = vadd.f32 %v1355, %v1458
        %v1460 = vpop.f32.mrb[0].mxu0
        %1461 = vmatprep.mubr.f32.mxu0 0.0
        %1462 = vmatmul.mubr.f32.gmra.mrb[0].mxu0 %v1308
        %v1463 = vpop.f32.mrb[0].mxu0
        %v1464 = vadd.f32 %v1355, %v1463
        %v1465 = vpop.f32.mrb[0].mxu0
        %1466 = vmatprep.mubr.f32.mxu0 0.0
        %1467 = vmatmul.mubr.f32.gmra.mrb[0].mxu0 %v1309
        %v1468 = vpop.f32.mrb[0].mxu0
        %v1469 = vadd.f32 %v1355, %v1468
        %v1470 = vpop.f32.mrb[0].mxu0
        %1471 = vmatprep.mubr.f32.mxu0 0.0
        %1472 = vmatmul.mubr.f32.gmra.mrb[0].mxu0 %v1310
        %v1473 = vpop.f32.mrb[0].mxu0
        %v1474 = vadd.f32 %v1355, %v1473
        %v1475 = vpop.f32.mrb[0].mxu0
        %1476 = vmatprep.mubr.f32.mxu0 0.0
        %1477 = vmatmul.mubr.f32.gmra.mrb[0].mxu0 %v1311
        %v1478 = vpop.f32.mrb[0].mxu0
        %v1479 = vadd.f32 %v1355, %v1478
        %v1480 = vpop.f32.mrb[0].mxu0
        %1481 = vmatprep.mubr.f32.mxu0 0.0
        %1482 = vmatmul.mubr.f32.gmra.mrb[0].mxu0 %v1312
        %v1483 = vpop.f32.mrb[0].mxu0
        %v1484 = vadd.f32 %v1355, %v1483
        %v1485 = vpop.f32.mrb[0].mxu0
        %1486 = vmatprep.mubr.f32.mxu0 0.0
        %1487 = vmatmul.mubr.f32.gmra.mrb[0].mxu0 %v1313
        %v1488 = vpop.f32.mrb[0].mxu0
        %v1489 = vadd.f32 %v1355, %v1488
        %v1490 = vpop.f32.mrb[0].mxu0
        %1491 = vmatprep.mubr.f32.mxu0 0.0
        %1492 = vmatmul.mubr.f32.gmra.mrb[0].mxu0 %v1314
        %v1493 = vpop.f32.mrb[0].mxu0
        %v1494 = vadd.f32 %v1355, %v1493
        %v1495 = vpop.f32.mrb[0].mxu0
        %1496 = vmatprep.mubr.f32.mxu0 0.0
        %1497 = vmatmul.mubr.f32.gmra.mrb[0].mxu0 %v1315
        %v1498 = vpop.f32.mrb[0].mxu0
        %v1499 = vadd.f32 %v1355, %v1498
        %v1500 = vpop.f32.mrb[0].mxu0
        %1501 = vmatprep.mubr.f32.mxu0 0.0
        %1502 = vmatmul.mubr.f32.gmra.mrb[0].mxu0 %v1316
        %v1503 = vpop.f32.mrb[0].mxu0
        %v1504 = vadd.f32 %v1355, %v1503
        %v1505 = vpop.f32.mrb[0].mxu0
        %1506 = vmatprep.mubr.f32.mxu0 0.0
        %1507 = vmatmul.mubr.f32.gmra.mrb[0].mxu0 %v1317
        %v1508 = vpop.f32.mrb[0].mxu0
        %v1509 = vadd.f32 %v1355, %v1508
        %v1510 = vpop.f32.mrb[0].mxu0
        %1511 = vmatprep.mubr.f32.mxu0 0.0
        %1512 = vmatmul.mubr.f32.gmra.mrb[0].mxu0 %v1318
        %v1513 = vpop.f32.mrb[0].mxu0
        %v1514 = vadd.f32 %v1355, %v1513
        %v1515 = vpop.f32.mrb[0].mxu0
        %1516 = vmatprep.mubr.f32.mxu0 0.0
        %1517 = vmatmul.mubr.f32.gmra.mrb[0].mxu0 %v1319
        %v1518 = vpop.f32.mrb[0].mxu0
        %v1519 = vadd.f32 %v1355, %v1518
        %v1520 = vpop.f32.mrb[0].mxu0
        %1521 = vmatprep.mubr.f32.mxu0 0.0
        %1522 = vmatmul.mubr.f32.gmra.mrb[0].mxu0 %v1320
        %v1523 = vpop.f32.mrb[0].mxu0
        %v1524 = vadd.f32 %v1355, %v1523
        %v1525 = vpop.f32.mrb[0].mxu0
        %1526 = vmatprep.mubr.f32.mxu0 0.0
        %1527 = vmatmul.mubr.f32.gmra.mrb[0].mxu0 %v1321
        %v1528 = vpop.f32.mrb[0].mxu0
        %v1529 = vadd.f32 %v1355, %v1528
        %v1530 = vpop.f32.mrb[0].mxu0
        %1531 = vmatprep.mubr.f32.mxu0 0.0
        %1532 = vmatmul.mubr.f32.gmra.mrb[0].mxu0 %v1322
        %v1533 = vpop.f32.mrb[0].mxu0
        %v1534 = vadd.f32 %v1355, %v1533
        %v1535 = vpop.f32.mrb[0].mxu0
        %1536 = vmatprep.mubr.f32.mxu0 0.0
        %1537 = vmatmul.mubr.f32.gmra.mrb[0].mxu0 %v1323
        %v1538 = vpop.f32.mrb[0].mxu0
        %v1539 = vadd.f32 %v1355, %v1538
        %v1540 = vpop.f32.mrb[0].mxu0
        %1541 = vmatprep.mubr.f32.mxu0 0.0
        %1542 = vmatmul.mubr.f32.gmra.mrb[0].mxu0 %v1324
        %v1543 = vpop.f32.mrb[0].mxu0
        %v1544 = vadd.f32 %v1355, %v1543
        %v1545 = vpop.f32.mrb[0].mxu0
        %1546 = vmatprep.mubr.f32.mxu0 0.0
        %1547 = vmatmul.mubr.f32.gmra.mrb[0].mxu0 %v1325
        %v1548 = vpop.f32.mrb[0].mxu0
        %v1549 = vadd.f32 %v1355, %v1548
        %v1550 = vpop.f32.mrb[0].mxu0
        %1551 = vmatprep.mubr.f32.mxu0 0.0
        %1552 = vmatmul.mubr.f32.gmra.mrb[0].mxu0 %v1326
        %v1553 = vpop.f32.mrb[0].mxu0
        %v1554 = vadd.f32 %v1355, %v1553
        %v1555 = vpop.f32.mrb[0].mxu0
        %1556 = vmatprep.mubr.f32.mxu0 0.0
        %1557 = vmatmul.mubr.f32.gmra.mrb[0].mxu0 %v1327
        %v1558 = vpop.f32.mrb[0].mxu0
        %v1559 = vadd.f32 %v1355, %v1558
        %v1560 = vpop.f32.mrb[0].mxu0
        %1561 = vmatprep.mubr.f32.mxu0 0.0
        %1562 = vmatmul.mubr.f32.gmra.mrb[0].mxu0 %v1328
        %v1563 = vpop.f32.mrb[0].mxu0
        %v1564 = vadd.f32 %v1355, %v1563
        %v1565 = vpop.f32.mrb[0].mxu0
        %1566 = vmatprep.mubr.f32.mxu0 0.0
        %1567 = vmatmul.mubr.f32.gmra.mrb[0].mxu0 %v1329
        %v1568 = vpop.f32.mrb[0].mxu0
        %v1569 = vadd.f32 %v1355, %v1568
        %v1570 = vpop.f32.mrb[0].mxu0
        %1571 = vmatprep.mubr.f32.mxu0 0.0
        %1572 = vmatmul.mubr.f32.gmra.mrb[0].mxu0 %v1330
        %v1573 = vpop.f32.mrb[0].mxu0
        %v1574 = vadd.f32 %v1355, %v1573
        %v1575 = vpop.f32.mrb[0].mxu0
        %1576 = vmatprep.mubr.f32.mxu0 0.0
        %1577 = vmatmul.mubr.f32.gmra.mrb[0].mxu0 %v1331
        %v1578 = vpop.f32.mrb[0].mxu0
        %v1579 = vadd.f32 %v1355, %v1578
        %v1580 = vpop.f32.mrb[0].mxu0
        %1581 = vdwg.mxu0
        %v1582 = vtanh.pop %v1424
        %v1583 = vtanh.pop %v1429
        %v1584 = vtanh.pop %v1434
        %v1585 = vtanh.pop %v1439
        %v1586 = vtanh.pop %v1444
        %v1587 = vtanh.pop %v1449
        %v1588 = vtanh.pop %v1454
        %v1589 = vtanh.pop %v1459
        %v1590 = vtanh.pop %v1464
        %v1591 = vtanh.pop %v1469
        %v1592 = vtanh.pop %v1474
        %v1593 = vtanh.pop %v1479
        %v1594 = vtanh.pop %v1484
        %v1595 = vtanh.pop %v1489
        %v1596 = vtanh.pop %v1494
        %v1597 = vtanh.pop %v1499
        %v1598 = vtanh.pop %v1504
        %v1599 = vtanh.pop %v1509
        %v1600 = vtanh.pop %v1514
        %v1601 = vtanh.pop %v1519
        %v1602 = vtanh.pop %v1524
        %v1603 = vtanh.pop %v1529
        %v1604 = vtanh.pop %v1534
        %v1605 = vtanh.pop %v1539
        %v1606 = vtanh.pop %v1544
        %v1607 = vtanh.pop %v1549
        %v1608 = vtanh.pop %v1554
        %v1609 = vtanh.pop %v1559
        %v1610 = vtanh.pop %v1564
        %v1611 = vtanh.pop %v1569
        %v1612 = vtanh.pop %v1574
        %v1613 = vtanh.pop %v1579
        %s1614 = scalar_lea.vmem [#allocation5], 640
        %v1615 = vld [vmem:[%s1614] sm:$0xff]
        %v1616 = vld [vmem:[%s1614 + $0x8] sm:$0xff]
        %v1617 = vld [vmem:[%s1614 + $0x10] sm:$0xff]
        %v1618 = vld [vmem:[%s1614 + $0x18] sm:$0xff]
        %v1619 = vld [vmem:[%s1614 + $0x20] sm:$0xff]
        %v1620 = vld [vmem:[%s1614 + $0x28] sm:$0xff]
        %v1621 = vld [vmem:[%s1614 + $0x30] sm:$0xff]
        %v1622 = vld [vmem:[%s1614 + $0x38] sm:$0xff]
        %v1623 = vld [vmem:[%s1614 + $0x40] sm:$0xff]
        %v1624 = vld [vmem:[%s1614 + $0x48] sm:$0xff]
        %v1625 = vld [vmem:[%s1614 + $0x50] sm:$0xff]
        %v1626 = vld [vmem:[%s1614 + $0x58] sm:$0xff]
        %v1627 = vld [vmem:[%s1614 + $0x60] sm:$0xff]
        %v1628 = vld [vmem:[%s1614 + $0x68] sm:$0xff]
        %v1629 = vld [vmem:[%s1614 + $0x70] sm:$0xff]
        %v1630 = vld [vmem:[%s1614 + $0x78] sm:$0xff]
        %s1631 = scalar_lea.vmem %s2, 5
        %v1632 = vld [vmem:[%s1631] sm:$0x1]
        %v1634 = vlaneseq
        %v1635 = vshrl.u32 %v1634, 7
        %v1636 = vsub.s32 0, %v1635
        %v1637 = vrot.slane %v1632, %v1636
        %1639 = vmatprep.subr.mxu0 0.0
        %1640 = vmatpush1.msra.mxu0 %v1615
        %1641 = vmatprep.subr.mxu0 0.0
        %1642 = vmatpush1.msra.mxu0 %v1616
        %1643 = vmatprep.subr.mxu0 0.0
        %1644 = vmatpush1.msra.mxu0 %v1617
        %1645 = vmatprep.subr.mxu0 0.0
        %1646 = vmatpush1.msra.mxu0 %v1618
        %1647 = vmatprep.subr.mxu0 0.0
        %1648 = vmatpush1.msra.mxu0 %v1619
        %1649 = vmatprep.subr.mxu0 0.0
        %1650 = vmatpush1.msra.mxu0 %v1620
        %1651 = vmatprep.subr.mxu0 0.0
        %1652 = vmatpush1.msra.mxu0 %v1621
        %1653 = vmatprep.subr.mxu0 0.0
        %1654 = vmatpush1.msra.mxu0 %v1622
        %1655 = vmatprep.subr.mxu0 0.0
        %1656 = vmatpush1.msra.mxu0 %v1623
        %1657 = vmatprep.subr.mxu0 0.0
        %1658 = vmatpush1.msra.mxu0 %v1624
        %1659 = vmatprep.subr.mxu0 0.0
        %1660 = vmatpush1.msra.mxu0 %v1625
        %1661 = vmatprep.subr.mxu0 0.0
        %1662 = vmatpush1.msra.mxu0 %v1626
        %1663 = vmatprep.subr.mxu0 0.0
        %1664 = vmatpush1.msra.mxu0 %v1627
        %1665 = vmatprep.subr.mxu0 0.0
        %1666 = vmatpush1.msra.mxu0 %v1628
        %1667 = vmatprep.subr.mxu0 0.0
        %1668 = vmatpush1.msra.mxu0 %v1629
        %1669 = vmatprep.subr.mxu0 0.0
        %1670 = vmatpush1.msra.mxu0 %v1630
        %1671 = vmatprep.subr.mxu0 0.0
        %1672 = vmatpush1.msra.mxu0 0.0
        %1673 = vmatprep.subr.mxu0 0.0
        %1674 = vmatpush1.msra.mxu0 0.0
        %1675 = vmatprep.subr.mxu0 0.0
        %1676 = vmatpush1.msra.mxu0 0.0
        %1677 = vmatprep.subr.mxu0 0.0
        %1678 = vmatpush1.msra.mxu0 0.0
        %1679 = vmatprep.subr.mxu0 0.0
        %1680 = vmatpush1.msra.mxu0 0.0
        %1681 = vmatprep.subr.mxu0 0.0
        %1682 = vmatpush1.msra.mxu0 0.0
        %1683 = vmatprep.subr.mxu0 0.0
        %1684 = vmatpush1.msra.mxu0 0.0
        %1685 = vmatprep.subr.mxu0 0.0
        %1686 = vmatpush1.msra.mxu0 0.0
        %1687 = vmatprep.subr.mxu0 0.0
        %1688 = vmatpush1.msra.mxu0 0.0
        %1689 = vmatprep.subr.mxu0 0.0
        %1690 = vmatpush1.msra.mxu0 0.0
        %1691 = vmatprep.subr.mxu0 0.0
        %1692 = vmatpush1.msra.mxu0 0.0
        %1693 = vmatprep.subr.mxu0 0.0
        %1694 = vmatpush1.msra.mxu0 0.0
        %1695 = vmatprep.subr.mxu0 0.0
        %1696 = vmatpush1.msra.mxu0 0.0
        %1697 = vmatprep.subr.mxu0 0.0
        %1698 = vmatpush1.msra.mxu0 0.0
        %1699 = vmatprep.subr.mxu0 0.0
        %1700 = vmatpush1.msra.mxu0 0.0
        %1701 = vmatprep.subr.mxu0 0.0
        %1702 = vmatpush1.msra.mxu0 0.0
        %1703 = vmatprep.mubr.f32.mxu0 0.0
        %1704 = vmatmul.mubr.f32.gmra.mrb[0].mxu0 %v1582
        %v1705 = vpop.f32.mrb[0].mxu0
        %v1706 = vadd.f32 %v1637, %v1705
        %v1707 = vpop.f32.mrb[0].mxu0
        %1708 = vmatprep.mubr.f32.mxu0 0.0
        %1709 = vmatmul.mubr.f32.gmra.mrb[0].mxu0 %v1583
        %v1710 = vpop.f32.mrb[0].mxu0
        %v1711 = vadd.f32 %v1637, %v1710
        %v1712 = vpop.f32.mrb[0].mxu0
        %1713 = vmatprep.mubr.f32.mxu0 0.0
        %1714 = vmatmul.mubr.f32.gmra.mrb[0].mxu0 %v1584
        %v1715 = vpop.f32.mrb[0].mxu0
        %v1716 = vadd.f32 %v1637, %v1715
        %v1717 = vpop.f32.mrb[0].mxu0
        %1718 = vmatprep.mubr.f32.mxu0 0.0
        %1719 = vmatmul.mubr.f32.gmra.mrb[0].mxu0 %v1585
        %v1720 = vpop.f32.mrb[0].mxu0
        %v1721 = vadd.f32 %v1637, %v1720
        %v1722 = vpop.f32.mrb[0].mxu0
        %1723 = vmatprep.mubr.f32.mxu0 0.0
        %1724 = vmatmul.mubr.f32.gmra.mrb[0].mxu0 %v1586
        %v1725 = vpop.f32.mrb[0].mxu0
        %v1726 = vadd.f32 %v1637, %v1725
        %v1727 = vpop.f32.mrb[0].mxu0
        %1728 = vmatprep.mubr.f32.mxu0 0.0
        %1729 = vmatmul.mubr.f32.gmra.mrb[0].mxu0 %v1587
        %v1730 = vpop.f32.mrb[0].mxu0
        %v1731 = vadd.f32 %v1637, %v1730
        %v1732 = vpop.f32.mrb[0].mxu0
        %1733 = vmatprep.mubr.f32.mxu0 0.0
        %1734 = vmatmul.mubr.f32.gmra.mrb[0].mxu0 %v1588
        %v1735 = vpop.f32.mrb[0].mxu0
        %v1736 = vadd.f32 %v1637, %v1735
        %v1737 = vpop.f32.mrb[0].mxu0
        %1738 = vmatprep.mubr.f32.mxu0 0.0
        %1739 = vmatmul.mubr.f32.gmra.mrb[0].mxu0 %v1589
        %v1740 = vpop.f32.mrb[0].mxu0
        %v1741 = vadd.f32 %v1637, %v1740
        %v1742 = vpop.f32.mrb[0].mxu0
        %1743 = vmatprep.mubr.f32.mxu0 0.0
        %1744 = vmatmul.mubr.f32.gmra.mrb[0].mxu0 %v1590
        %v1745 = vpop.f32.mrb[0].mxu0
        %v1746 = vadd.f32 %v1637, %v1745
        %v1747 = vpop.f32.mrb[0].mxu0
        %1748 = vmatprep.mubr.f32.mxu0 0.0
        %1749 = vmatmul.mubr.f32.gmra.mrb[0].mxu0 %v1591
        %v1750 = vpop.f32.mrb[0].mxu0
        %v1751 = vadd.f32 %v1637, %v1750
        %v1752 = vpop.f32.mrb[0].mxu0
        %1753 = vmatprep.mubr.f32.mxu0 0.0
        %1754 = vmatmul.mubr.f32.gmra.mrb[0].mxu0 %v1592
        %v1755 = vpop.f32.mrb[0].mxu0
        %v1756 = vadd.f32 %v1637, %v1755
        %v1757 = vpop.f32.mrb[0].mxu0
        %1758 = vmatprep.mubr.f32.mxu0 0.0
        %1759 = vmatmul.mubr.f32.gmra.mrb[0].mxu0 %v1593
        %v1760 = vpop.f32.mrb[0].mxu0
        %v1761 = vadd.f32 %v1637, %v1760
        %v1762 = vpop.f32.mrb[0].mxu0
        %1763 = vmatprep.mubr.f32.mxu0 0.0
        %1764 = vmatmul.mubr.f32.gmra.mrb[0].mxu0 %v1594
        %v1765 = vpop.f32.mrb[0].mxu0
        %v1766 = vadd.f32 %v1637, %v1765
        %v1767 = vpop.f32.mrb[0].mxu0
        %1768 = vmatprep.mubr.f32.mxu0 0.0
        %1769 = vmatmul.mubr.f32.gmra.mrb[0].mxu0 %v1595
        %v1770 = vpop.f32.mrb[0].mxu0
        %v1771 = vadd.f32 %v1637, %v1770
        %v1772 = vpop.f32.mrb[0].mxu0
        %1773 = vmatprep.mubr.f32.mxu0 0.0
        %1774 = vmatmul.mubr.f32.gmra.mrb[0].mxu0 %v1596
        %v1775 = vpop.f32.mrb[0].mxu0
        %v1776 = vadd.f32 %v1637, %v1775
        %v1777 = vpop.f32.mrb[0].mxu0
        %1778 = vmatprep.mubr.f32.mxu0 0.0
        %1779 = vmatmul.mubr.f32.gmra.mrb[0].mxu0 %v1597
        %v1780 = vpop.f32.mrb[0].mxu0
        %v1781 = vadd.f32 %v1637, %v1780
        %v1782 = vpop.f32.mrb[0].mxu0
        %1783 = vmatprep.mubr.f32.mxu0 0.0
        %1784 = vmatmul.mubr.f32.gmra.mrb[0].mxu0 %v1598
        %v1785 = vpop.f32.mrb[0].mxu0
        %v1786 = vadd.f32 %v1637, %v1785
        %v1787 = vpop.f32.mrb[0].mxu0
        %1788 = vmatprep.mubr.f32.mxu0 0.0
        %1789 = vmatmul.mubr.f32.gmra.mrb[0].mxu0 %v1599
        %v1790 = vpop.f32.mrb[0].mxu0
        %v1791 = vadd.f32 %v1637, %v1790
        %v1792 = vpop.f32.mrb[0].mxu0
        %1793 = vmatprep.mubr.f32.mxu0 0.0
        %1794 = vmatmul.mubr.f32.gmra.mrb[0].mxu0 %v1600
        %v1795 = vpop.f32.mrb[0].mxu0
        %v1796 = vadd.f32 %v1637, %v1795
        %v1797 = vpop.f32.mrb[0].mxu0
        %1798 = vmatprep.mubr.f32.mxu0 0.0
        %1799 = vmatmul.mubr.f32.gmra.mrb[0].mxu0 %v1601
        %v1800 = vpop.f32.mrb[0].mxu0
        %v1801 = vadd.f32 %v1637, %v1800
        %v1802 = vpop.f32.mrb[0].mxu0
        %1803 = vmatprep.mubr.f32.mxu0 0.0
        %1804 = vmatmul.mubr.f32.gmra.mrb[0].mxu0 %v1602
        %v1805 = vpop.f32.mrb[0].mxu0
        %v1806 = vadd.f32 %v1637, %v1805
        %v1807 = vpop.f32.mrb[0].mxu0
        %1808 = vmatprep.mubr.f32.mxu0 0.0
        %1809 = vmatmul.mubr.f32.gmra.mrb[0].mxu0 %v1603
        %v1810 = vpop.f32.mrb[0].mxu0
        %v1811 = vadd.f32 %v1637, %v1810
        %v1812 = vpop.f32.mrb[0].mxu0
        %1813 = vmatprep.mubr.f32.mxu0 0.0
        %1814 = vmatmul.mubr.f32.gmra.mrb[0].mxu0 %v1604
        %v1815 = vpop.f32.mrb[0].mxu0
        %v1816 = vadd.f32 %v1637, %v1815
        %v1817 = vpop.f32.mrb[0].mxu0
        %1818 = vmatprep.mubr.f32.mxu0 0.0
        %1819 = vmatmul.mubr.f32.gmra.mrb[0].mxu0 %v1605
        %v1820 = vpop.f32.mrb[0].mxu0
        %v1821 = vadd.f32 %v1637, %v1820
        %v1822 = vpop.f32.mrb[0].mxu0
        %1823 = vmatprep.mubr.f32.mxu0 0.0
        %1824 = vmatmul.mubr.f32.gmra.mrb[0].mxu0 %v1606
        %v1825 = vpop.f32.mrb[0].mxu0
        %v1826 = vadd.f32 %v1637, %v1825
        %v1827 = vpop.f32.mrb[0].mxu0
        %1828 = vmatprep.mubr.f32.mxu0 0.0
        %1829 = vmatmul.mubr.f32.gmra.mrb[0].mxu0 %v1607
        %v1830 = vpop.f32.mrb[0].mxu0
        %v1831 = vadd.f32 %v1637, %v1830
        %v1832 = vpop.f32.mrb[0].mxu0
        %1833 = vmatprep.mubr.f32.mxu0 0.0
        %1834 = vmatmul.mubr.f32.gmra.mrb[0].mxu0 %v1608
        %v1835 = vpop.f32.mrb[0].mxu0
        %v1836 = vadd.f32 %v1637, %v1835
        %v1837 = vpop.f32.mrb[0].mxu0
        %1838 = vmatprep.mubr.f32.mxu0 0.0
        %1839 = vmatmul.mubr.f32.gmra.mrb[0].mxu0 %v1609
        %v1840 = vpop.f32.mrb[0].mxu0
        %v1841 = vadd.f32 %v1637, %v1840
        %v1842 = vpop.f32.mrb[0].mxu0
        %1843 = vmatprep.mubr.f32.mxu0 0.0
        %1844 = vmatmul.mubr.f32.gmra.mrb[0].mxu0 %v1610
        %v1845 = vpop.f32.mrb[0].mxu0
        %v1846 = vadd.f32 %v1637, %v1845
        %v1847 = vpop.f32.mrb[0].mxu0
        %1848 = vmatprep.mubr.f32.mxu0 0.0
        %1849 = vmatmul.mubr.f32.gmra.mrb[0].mxu0 %v1611
        %v1850 = vpop.f32.mrb[0].mxu0
        %v1851 = vadd.f32 %v1637, %v1850
        %v1852 = vpop.f32.mrb[0].mxu0
        %1853 = vmatprep.mubr.f32.mxu0 0.0
        %1854 = vmatmul.mubr.f32.gmra.mrb[0].mxu0 %v1612
        %v1855 = vpop.f32.mrb[0].mxu0
        %v1856 = vadd.f32 %v1637, %v1855
        %v1857 = vpop.f32.mrb[0].mxu0
        %1858 = vmatprep.mubr.f32.mxu0 0.0
        %1859 = vmatmul.mubr.f32.gmra.mrb[0].mxu0 %v1613
        %v1860 = vpop.f32.mrb[0].mxu0
        %v1861 = vadd.f32 %v1637, %v1860
        %v1862 = vpop.f32.mrb[0].mxu0
        %1863 = vdwg.mxu0
        %1864 = vst [vmem:[%s203] sm:$0xff] %v1706
        %1865 = vst [vmem:[%s203 + $0x8] sm:$0xff] %v1711
        %1866 = vst [vmem:[%s203 + $0x10] sm:$0xff] %v1716
        %1867 = vst [vmem:[%s203 + $0x18] sm:$0xff] %v1721
        %1868 = vst [vmem:[%s203 + $0x20] sm:$0xff] %v1726
        %1869 = vst [vmem:[%s203 + $0x28] sm:$0xff] %v1731
        %1870 = vst [vmem:[%s203 + $0x30] sm:$0xff] %v1736
        %1871 = vst [vmem:[%s203 + $0x38] sm:$0xff] %v1741
        %1872 = vst [vmem:[%s203 + $0x40] sm:$0xff] %v1746
        %1873 = vst [vmem:[%s203 + $0x48] sm:$0xff] %v1751
        %1874 = vst [vmem:[%s203 + $0x50] sm:$0xff] %v1756
        %1875 = vst [vmem:[%s203 + $0x58] sm:$0xff] %v1761
        %1876 = vst [vmem:[%s203 + $0x60] sm:$0xff] %v1766
        %1877 = vst [vmem:[%s203 + $0x68] sm:$0xff] %v1771
        %1878 = vst [vmem:[%s203 + $0x70] sm:$0xff] %v1776
        %1879 = vst [vmem:[%s203 + $0x78] sm:$0xff] %v1781
        %1880 = vst [vmem:[%s203 + $0x80] sm:$0xff] %v1786
        %1881 = vst [vmem:[%s203 + $0x88] sm:$0xff] %v1791
        %1882 = vst [vmem:[%s203 + $0x90] sm:$0xff] %v1796
        %1883 = vst [vmem:[%s203 + $0x98] sm:$0xff] %v1801
        %1884 = vst [vmem:[%s203 + $0xa0] sm:$0xff] %v1806
        %1885 = vst [vmem:[%s203 + $0xa8] sm:$0xff] %v1811
        %1886 = vst [vmem:[%s203 + $0xb0] sm:$0xff] %v1816
        %1887 = vst [vmem:[%s203 + $0xb8] sm:$0xff] %v1821
        %1888 = vst [vmem:[%s203 + $0xc0] sm:$0xff] %v1826
        %1889 = vst [vmem:[%s203 + $0xc8] sm:$0xff] %v1831
        %1890 = vst [vmem:[%s203 + $0xd0] sm:$0xff] %v1836
        %1891 = vst [vmem:[%s203 + $0xd8] sm:$0xff] %v1841
        %1892 = vst [vmem:[%s203 + $0xe0] sm:$0xff] %v1846
        %1893 = vst [vmem:[%s203 + $0xe8] sm:$0xff] %v1851
        %1894 = vst [vmem:[%s203 + $0xf0] sm:$0xff] %v1856
        %1895 = vst [vmem:[%s203 + $0xf8] sm:$0xff] %v1861
        %s1896 = sand.u32 %s97, 1
        %s1897 = scalar_lea.sflag [#allocation4], %s1896
        %s1898 = sand.u32 %s97, 1
        %s1899 = smul.addr %s1898, 256
        %s1900 = scalar_lea.vmem [#allocation7], %s1899
        // Predicated region
        $region41: #{tpu_custom_call.1} parent=31 // pred_check
          %p1901 = pneg %p107
        $region42: #{tpu_custom_call.1} parent=31 // pred_check_branch
          %1903 = sbr.rel (%p1901) target = $region44
        $region43: #{tpu_custom_call.1} parent=31 // pred_region
          %s1904 = smul.u32 32, %s21
          %s1906 = ssub.s32 4096, 4096
          %1907 = vsyncadd %s1897, %s1906
          %s1908 = smul.addr %s1904, 128
          %s1909 = scalar_lea.hbm %s3, %s1908
          %s1910 = sshll.u32 %s1900, 4
          %s1911 = int_to_ptr.vmem [resolvable:$true] %s1910
          %1916 = dma.vmem_to_hbm [thread:$0]  %s1911, 4096, %s1909, %s1897, 128, 128, 8
        $region44: #{tpu_custom_call.1} parent=31 // pred_fallthru
          _
      $region32: #{tpu_custom_call.1} parent=5 // pred_fallthru
        _
      %p1917 = scmp.le.s32.totalorder 2, %s16
      // Predicated region
      $region45: #{tpu_custom_call.1} parent=5 // pred_check
        %p1918 = pneg %p1917
      $region46: #{tpu_custom_call.1} parent=5 // pred_check_branch
        %1920 = sbr.rel (%p1918) target = $region48
      $region47: #{tpu_custom_call.1} parent=5 // pred_region
        %s1921 = ssub.s32 %s16, 2
        // Predicated region
        $region49: #{tpu_custom_call.1} parent=47 // pred_check
          %p1922 = pneg %p113
        $region50: #{tpu_custom_call.1} parent=47 // pred_check_branch
          %1924 = sbr.rel (%p1922) target = $region52
        $region51: #{tpu_custom_call.1} parent=47 // pred_region
          %s1925 = sand.u32 %s98, 1
          %s1926 = scalar_lea.sflag [#allocation4], %s1925
          %s1927 = sand.u32 %s98, 1
          %s1928 = smul.addr %s1927, 256
          %s1929 = scalar_lea.vmem [#allocation7], %s1928
          %1930 = dma.done %s1926, 4096
        $region52: #{tpu_custom_call.1} parent=47 // pred_fallthru
          _
      $region48: #{tpu_custom_call.1} parent=5 // pred_fallthru
        _
    $region6: #{tpu_custom_call.1} parent=1 // loop_footer
      %s20 = sadd.s32 1, %s16
    $region7: #{tpu_custom_call.1} parent=1 // loop_footer_branch
      %15 = sbr.rel target = $region3
    $region8: #{tpu_custom_call.1} parent=1 // loop_exit
      _
    %1931 = vsyncpa [#allocation3], 1
    %s1932 = scalar_lea.sflag [#allocation3], 1
    %1933 = vsyncpa %s1932, 1
    %1934 = vsyncpa [#allocation6], 1
    %1935 = vsyncpa [#allocation4], 1
    %s1936 = scalar_lea.sflag [#allocation4], 1
    %1937 = vsyncpa %s1936, 1

</llo_original>
